<compile_context>
chip_gen: v7x
topology: tpu7x:2x2x1
jax: 0.10.0
libtpu: 0.0.40
codegen_flags: <defaults>
</compile_context>

<pallas_src>
import functools
import math

import jax
import jax.numpy as jnp
from jax.experimental import pallas as pl
from jax.experimental.pallas import tpu as pltpu


# ----------------------------------------------------------------------------
# Exact-enough GELU from Mosaic-safe ops only.
# Abramowitz & Stegun 7.1.26 erf approximation, max abs error 1.5e-7.
# The reciprocal runs on the EUP (approx) + one Newton step on the VPU.
# ----------------------------------------------------------------------------
_SQRT_HALF = 0.7071067811865476


def _erf_approx(x):
    p = 0.3275911
    a1, a2, a3, a4, a5 = (0.254829592, -0.284496736, 1.421413741,
                          -1.453152027, 1.061405429)
    ax = jnp.abs(x)
    den = 1.0 + p * ax
    t0 = pl.reciprocal(den, approx=True)
    t = t0 * (2.0 - den * t0)                      # Newton refinement -> ~f32
    poly = ((((a5 * t + a4) * t + a3) * t + a2) * t + a1) * t
    y = 1.0 - poly * jnp.exp(-(ax * ax))
    return jnp.where(x < 0.0, -y, y)


def _gelu(x):
    return 0.5 * x * (1.0 + _erf_approx(x * _SQRT_HALF))


# ----------------------------------------------------------------------------
# Kernel
# ----------------------------------------------------------------------------
def _make_ghost_kernel(*, H, W, T, P, taps, act, halo):
    """T: spatial tile (lanes). P: halo width (0 if single spatial tile).

    taps: tuple of (sh, sw) offsets of the depthwise window.
    """
    HW = H * W
    WIN = T + 2 * P

    def body(xw, wpos_ref, w1_ref, b1_ref, wd_ref, b2_ref, o_ref):
        # xw     : (C_in, WIN)   input window (channels on sublanes)
        # wpos_ref:(1, T)        column index (w) of each output position
        # w1_ref : (Ct, C_in)    primary 1x1 conv weight (BN scale folded)
        # b1_ref : (Ct, 1)       primary folded BN bias
        # wd_ref : (KK, Ct, 1)   depthwise taps (BN scale folded)
        # b2_ref : (Ct, 1)       cheap folded BN bias
        # o_ref  : (1, 2, Ct, T) [:,0]=primary branch, [:,1]=cheap branch
        sp = pl.program_id(2)
        p0 = sp * T                                       # global flat start

        # ---- primary branch: 1x1 conv as one lane-dense MXU matmul --------
        y1 = jnp.dot(w1_ref[...], xw, preferred_element_type=jnp.float32)
        y1 = y1 + b1_ref[...]
        if act:
            y1 = _gelu(y1)
        o_ref[0, 0] = y1[:, P:P + T].astype(o_ref.dtype)

        # ---- cheap branch: 3x3 depthwise via lane rolls + in-kernel masks -
        idx = p0 + jax.lax.broadcasted_iota(jnp.int32, (1, T), 1)  # flat pos
        wpos = wpos_ref[...]                                       # (1, T)
        wd_all = wd_ref[...]                                       # hoisted

        acc = jnp.zeros((y1.shape[0], T), jnp.float32)
        for k, (sh, sw) in enumerate(taps):
            d = sh * W + sw
            shift = (-(P + d)) % WIN
            rolled = pltpu.roll(y1, shift, 1) if shift else y1
            shifted = rolled[:, :T]                                # (Ct, T)

            # zero-padding validity of the (h+sh, w+sw) neighbour
            conds = []
            if sh < 0:
                conds.append(idx >= (-sh) * W)
            elif sh > 0:
                conds.append(idx < (H - sh) * W)
            if sw < 0:
                conds.append(wpos >= -sw)
            elif sw > 0:
                conds.append(wpos < W - sw)
            if conds:
                valid = functools.reduce(lambda a, b: a & b, conds)
                shifted = jnp.where(valid, shifted, 0.0)

            acc = acc + shifted * wd_all[k]                        # (Ct,1) bcast

        y2 = acc + b2_ref[...]
        if act:
            y2 = _gelu(y2)
        o_ref[0, 1] = y2.astype(o_ref.dtype)

    if halo:
        def kernel(xp_ref, xc_ref, xn_ref, wpos_ref, w1_ref, b1_ref, wd_ref,
                   b2_ref, o_ref):
            # halo recompute: last P lanes of prev tile + current + first P of next
            xw = jnp.concatenate(
                [xp_ref[0, :, T - P:], xc_ref[0], xn_ref[0, :, :P]], axis=1)
            body(xw, wpos_ref, w1_ref, b1_ref, wd_ref, b2_ref, o_ref)
    else:
        def kernel(xc_ref, wpos_ref, w1_ref, b1_ref, wd_ref, b2_ref, o_ref):
            # single spatial tile: rolls wrap around the full image; the
            # wrapped contributions are always killed by the validity masks.
            body(xc_ref[0], wpos_ref, w1_ref, b1_ref, wd_ref, b2_ref, o_ref)

    return kernel


# ----------------------------------------------------------------------------
# Wrapper
# ----------------------------------------------------------------------------
def _ceil_to(v, m):
    return -(-v // m) * m


def _pick_spatial_tile(HW, maxd):
    """Largest multiple-of-128 tile dividing HW (capped ~4K lanes), halo-able."""
    if HW % 128 != 0 or HW <= 128:
        return HW
    halo = _ceil_to(maxd, 128)
    cands = [t for t in range(128, HW, 128) if HW % t == 0 and t >= halo]
    if not cands:
        return HW
    good = [t for t in cands if t <= 4096]
    return max(good) if good else min(cands)


def ghost_module(x, params, *, oup, dw_size=3, act=True, eps=1e-5):
    """GhostModule forward (k=1, s=1, ratio=2), eval-mode BatchNorm.

    x: (N, C_in, H, W).  Returns (N, oup, H, W) in x.dtype.
    """
    N, C_in, H, W = x.shape
    HW = H * W

    w_primary = params["w_primary"]          # (IC, C_in, 1, 1)
    g1, be1, m1, v1 = params["bn1"]          # each (IC,)
    w_cheap = params["w_cheap"]              # (IC, 1, dw, dw)
    g2, be2, m2, v2 = params["bn2"]          # each (IC,)

    IC = w_primary.shape[0]
    assert w_primary.shape[2] == 1 and w_primary.shape[3] == 1
    assert w_cheap.shape[0] == IC and w_cheap.shape[1] == 1
    assert oup <= 2 * IC and dw_size % 2 == 1

    # ---- fold eval-mode BN into conv weights / biases (host-side glue) ----
    s1 = g1 / jnp.sqrt(v1 + eps)
    w1 = (w_primary[:, :, 0, 0] * s1[:, None]).astype(jnp.float32)   # (IC, C_in)
    b1 = (be1 - m1 * s1).reshape(IC, 1).astype(jnp.float32)
    s2 = g2 / jnp.sqrt(v2 + eps)
    wdc = (w_cheap[:, 0] * s2[:, None, None]).astype(jnp.float32)    # (IC, dw, dw)
    b2 = (be2 - m2 * s2).reshape(IC, 1).astype(jnp.float32)

    r = dw_size // 2
    taps = tuple((sh, sw) for sh in range(-r, r + 1) for sw in range(-r, r + 1))
    KK = len(taps)
    wd_taps = jnp.stack([wdc[:, sh + r, sw + r] for sh, sw in taps],
                        axis=0).reshape(KK, IC, 1)                   # (KK, IC, 1)

    # tiny lane-dense column-index row (avoids in-kernel integer div/mod)
    wpos = (jnp.arange(HW, dtype=jnp.int32) % W).reshape(1, HW)

    # ---- spatial tiling (halo recomputed from neighbouring x blocks) ------
    maxd = r * (W + 1)                       # largest |flat offset| of a tap
    T = _pick_spatial_tile(HW, maxd)
    n_sp = HW // T
    P = 0 if n_sp == 1 else _ceil_to(maxd, 128)
    halo = n_sp > 1
    assert (not halo) or (maxd <= P <= T)

    # ---- channel tiling: only to keep both v7x cores busy when (N, n_sp)
    #      would otherwise be a single grid step -----------------------------
    if N * n_sp < 2 and IC % 16 == 0:
        n_ct, Ct = 2, IC // 2
    else:
        n_ct, Ct = 1, IC

    # NCHW -> (N, C, H*W) is a FREE reshape: channels stay on sublanes and the
    # flattened spatial axis is the lane-dense minor dim.  No transposes.
    x_flat = x.reshape(N, C_in, HW).astype(jnp.float32)

    kernel = _make_ghost_kernel(H=H, W=W, T=T, P=P, taps=taps, act=act,
                                halo=halo)

    if halo:
        x_specs = [
            pl.BlockSpec((1, C_in, T),
                         lambda n, c, s: (n, 0, jnp.maximum(s - 1, 0))),
            pl.BlockSpec((1, C_in, T), lambda n, c, s: (n, 0, s)),
            pl.BlockSpec((1, C_in, T),
                         lambda n, c, s: (n, 0, jnp.minimum(s + 1, n_sp - 1))),
        ]
        x_args = (x_flat, x_flat, x_flat)
    else:
        x_specs = [pl.BlockSpec((1, C_in, HW), lambda n, c, s: (n, 0, 0))]
        x_args = (x_flat,)

    in_specs = x_specs + [
        pl.BlockSpec((1, T), lambda n, c, s: (0, s)),           # wpos
        pl.BlockSpec((Ct, C_in), lambda n, c, s: (c, 0)),       # w1
        pl.BlockSpec((Ct, 1), lambda n, c, s: (c, 0)),          # b1
        pl.BlockSpec((KK, Ct, 1), lambda n, c, s: (0, c, 0)),   # depthwise taps
        pl.BlockSpec((Ct, 1), lambda n, c, s: (c, 0)),          # b2
    ]

    # VMEM budget from actual block bytes (double-buffered) + live temps,
    # capped at 48 MiB so it is safe on v7x (64 MiB physical).
    def _r8(v):
        return _ceil_to(v, 8)

    def _r128(v):
        return _ceil_to(v, 128)

    WIN = T + 2 * P
    x_blk = len(x_args) * _r8(C_in) * _r128(T) * 4
    out_blk = 2 * _r8(Ct) * _r128(T) * 4
    const_blk = (_r8(Ct) * _r128(C_in) + 2 * _r8(Ct) * 128
                 + KK * _r8(Ct) * 128 + 8 * _r128(T)) * 4
    live = 8 * _r8(Ct) * _r128(WIN) * 4
    vmem_limit = int(min(max(2 * (x_blk + out_blk + const_blk) + live
                             + (4 << 20), 32 << 20), 48 << 20))

    out = pl.pallas_call(
        kernel,
        out_shape=jax.ShapeDtypeStruct((N, 2, IC, HW), x.dtype),
        grid_spec=pltpu.PrefetchScalarGridSpec(
            num_scalar_prefetch=0,
            grid=(N, n_ct, n_sp),
            in_specs=in_specs,
            out_specs=pl.BlockSpec((1, 2, Ct, T),
                                   lambda n, c, s: (n, 0, c, s)),
        ),
        compiler_params=pltpu.CompilerParams(
            dimension_semantics=("parallel", "parallel", "parallel"),
            vmem_limit_bytes=vmem_limit,
        ),
    )(*x_args, wpos, w1, b1, wd_taps, b2)

    # (N, 2, IC, HW) -> (N, 2*IC, H, W) is a contiguous (free) reshape and the
    # channel order is exactly cat([primary, cheap], dim=1).
    y = out.reshape(N, 2 * IC, H, W)
    return y[:, :oup]


# ----------------------------------------------------------------------------
# Pure-JAX reference (mirrors the PyTorch module, eval-mode BN, exact GELU)
# ----------------------------------------------------------------------------
def _reference(x, params, *, oup, dw_size=3, act=True, eps=1e-5):
    N, C_in, H, W = x.shape
    w1 = params["w_primary"][:, :, 0, 0]
    g1, be1, m1, v1 = params["bn1"]
    wdc = params["w_cheap"][:, 0]
    g2, be2, m2, v2 = params["bn2"]

    y1 = jnp.einsum('oc,nchw->nohw', w1, x)
    y1 = ((y1 - m1[None, :, None, None]) / jnp.sqrt(v1 + eps)[None, :, None, None]
          * g1[None, :, None, None] + be1[None, :, None, None])
    if act:
        y1 = jax.nn.gelu(y1, approximate=False)

    r = dw_size // 2
    y1p = jnp.pad(y1, ((0, 0), (0, 0), (r, r), (r, r)))
    y2 = jnp.zeros_like(y1)
    for kh in range(dw_size):
        for kw in range(dw_size):
            y2 = y2 + wdc[None, :, kh, kw, None, None] * y1p[:, :, kh:kh + H, kw:kw + W]
    y2 = ((y2 - m2[None, :, None, None]) / jnp.sqrt(v2 + eps)[None, :, None, None]
          * g2[None, :, None, None] + be2[None, :, None, None])
    if act:
        y2 = jax.nn.gelu(y2, approximate=False)

    return jnp.concatenate([y1, y2], axis=1)[:, :oup]


if __name__ == "__main__":
    key = jax.random.PRNGKey(0)
    ks = jax.random.split(key, 12)

    N, C_in, H, W = 2, 4, 16, 16
    oup, ratio, dw_size = 7, 2, 3                 # odd oup exercises the slice
    IC = math.ceil(oup / ratio)                   # init_channels = 4

    x = jax.random.normal(ks[0], (N, C_in, H, W), dtype=jnp.float32)
    params = {
        "w_primary": jax.random.normal(ks[1], (IC, C_in, 1, 1), jnp.float32) * 0.5,
        "bn1": (jax.random.uniform(ks[2], (IC,), jnp.float32, 0.5, 1.5),
                jax.random.normal(ks[3], (IC,), jnp.float32) * 0.1,
                jax.random.normal(ks[4], (IC,), jnp.float32) * 0.1,
                jax.random.uniform(ks[5], (IC,), jnp.float32, 0.5, 1.5)),
        "w_cheap": jax.random.normal(ks[6], (IC, 1, dw_size, dw_size), jnp.float32) * 0.3,
        "bn2": (jax.random.uniform(ks[7], (IC,), jnp.float32, 0.5, 1.5),
                jax.random.normal(ks[8], (IC,), jnp.float32) * 0.1,
                jax.random.normal(ks[9], (IC,), jnp.float32) * 0.1,
                jax.random.uniform(ks[10], (IC,), jnp.float32, 0.5, 1.5)),
    }

    out = ghost_module(x, params, oup=oup, dw_size=dw_size, act=True)
    out = jax.block_until_ready(out)

    ref = _reference(x, params, oup=oup, dw_size=dw_size, act=True)
    assert out.shape == (N, oup, H, W)
    err = float(jnp.max(jnp.abs(out - ref)))
    assert err < 1e-4, f"max abs err {err}"
    print("KERNEL_OK")
</pallas_src>

<mosaic_0001>
module attributes {stable_mosaic.version = 11 : i64} {
  func.func @kernel(%arg0: i32, %arg1: i32, %arg2: i32, %arg3: memref<1x4x128xf32, #tpu.memory_space<vmem>>, %arg4: memref<1x4x128xf32, #tpu.memory_space<vmem>>, %arg5: memref<1x4x128xf32, #tpu.memory_space<vmem>>, %arg6: memref<1x128xi32, #tpu.memory_space<vmem>>, %arg7: memref<4x4xf32, #tpu.memory_space<vmem>>, %arg8: memref<4x1xf32, #tpu.memory_space<vmem>>, %arg9: memref<9x4x1xf32, #tpu.memory_space<vmem>>, %arg10: memref<4x1xf32, #tpu.memory_space<vmem>>, %arg11: memref<1x2x4x128xf32, #tpu.memory_space<vmem>>) attributes {dimension_semantics = [#tpu.dimension_semantics<parallel>, #tpu.dimension_semantics<parallel>, #tpu.dimension_semantics<parallel>], iteration_bounds = array<i64: 2, 1, 2>, scalar_prefetch = 0 : i64, scratch_operands = 0 : i64, tpu.core_type = #tpu.core_type<tc>, window_params = [{transform_indices = @transform_0, window_bounds = array<i64: 1, 4, 128>}, {transform_indices = @transform_1, window_bounds = array<i64: 1, 4, 128>}, {transform_indices = @transform_2, window_bounds = array<i64: 1, 4, 128>}, {transform_indices = @transform_3, window_bounds = array<i64: 1, 128>}, {transform_indices = @transform_4, window_bounds = array<i64: 4, 4>}, {transform_indices = @transform_5, window_bounds = array<i64: 4, 1>}, {transform_indices = @transform_6, window_bounds = array<i64: 9, 4, 1>}, {transform_indices = @transform_7, window_bounds = array<i64: 4, 1>}, {transform_indices = @transform_8, window_bounds = array<i64: 1, 2, 4, 128>}]} {
    %c0 = arith.constant 0 : index
    %c0_0 = arith.constant 0 : index
    %c0_1 = arith.constant 0 : index
    %0 = vector.load %arg3[%c0, %c0_0, %c0_1] : memref<1x4x128xf32, #tpu.memory_space<vmem>>, vector<1x4x128xf32>
    %1 = vector.shape_cast %0 : vector<1x4x128xf32> to vector<4x128xf32>
    %c0_2 = arith.constant 0 : index
    %c0_3 = arith.constant 0 : index
    %c0_4 = arith.constant 0 : index
    %2 = vector.load %arg4[%c0_2, %c0_3, %c0_4] : memref<1x4x128xf32, #tpu.memory_space<vmem>>, vector<1x4x128xf32>
    %3 = vector.shape_cast %2 : vector<1x4x128xf32> to vector<4x128xf32>
    %c0_5 = arith.constant 0 : index
    %c0_6 = arith.constant 0 : index
    %c0_7 = arith.constant 0 : index
    %4 = vector.load %arg5[%c0_5, %c0_6, %c0_7] : memref<1x4x128xf32, #tpu.memory_space<vmem>>, vector<1x4x128xf32>
    %5 = vector.shape_cast %4 : vector<1x4x128xf32> to vector<4x128xf32>
    %6 = tpu.concatenate %1, %3, %5 in 1 : vector<4x128xf32>, vector<4x128xf32>, vector<4x128xf32> -> vector<4x384xf32>
    %c128_i32 = arith.constant 128 : i32
    %7 = arith.muli %arg2, %c128_i32 : i32
    %c0_8 = arith.constant 0 : index
    %c0_9 = arith.constant 0 : index
    %8 = vector.load %arg7[%c0_8, %c0_9] : memref<4x4xf32, #tpu.memory_space<vmem>>, vector<4x4xf32>
    %cst = arith.constant dense<0.000000e+00> : vector<4x384xf32>
    %9 = tpu.matmul %8, %6, %cst {dimension_numbers = #tpu.dot_dimension_numbers<[1], [0], [0], [1], [0, 0, 1, 1], [], []>} : vector<4x4xf32>, vector<4x384xf32>, vector<4x384xf32> -> vector<4x384xf32>
    %c0_10 = arith.constant 0 : index
    %c0_11 = arith.constant 0 : index
    %10 = vector.load %arg8[%c0_10, %c0_11] : memref<4x1xf32, #tpu.memory_space<vmem>>, vector<4x1xf32>
    %11 = vector.broadcast %10 : vector<4x1xf32> to vector<4x384xf32>
    %12 = arith.addf %9, %11 : vector<4x384xf32>
    %cst_12 = arith.constant 5.000000e-01 : f32
    %13 = vector.broadcast %cst_12 : f32 to vector<4x384xf32>
    %14 = arith.mulf %13, %12 : vector<4x384xf32>
    %cst_13 = arith.constant 0.707106769 : f32
    %15 = vector.broadcast %cst_13 : f32 to vector<4x384xf32>
    %16 = arith.mulf %12, %15 : vector<4x384xf32>
    %17 = math.absf %16 : vector<4x384xf32>
    %cst_14 = arith.constant 0.327591091 : f32
    %18 = vector.broadcast %cst_14 : f32 to vector<4x384xf32>
    %19 = arith.mulf %18, %17 : vector<4x384xf32>
    %cst_15 = arith.constant 1.000000e+00 : f32
    %20 = vector.broadcast %cst_15 : f32 to vector<4x384xf32>
    %21 = arith.addf %20, %19 : vector<4x384xf32>
    %22 = tpu.reciprocal %21 {approx = true} : vector<4x384xf32> -> vector<4x384xf32>
    %23 = arith.mulf %21, %22 : vector<4x384xf32>
    %cst_16 = arith.constant 2.000000e+00 : f32
    %24 = vector.broadcast %cst_16 : f32 to vector<4x384xf32>
    %25 = arith.subf %24, %23 : vector<4x384xf32>
    %26 = arith.mulf %22, %25 : vector<4x384xf32>
    %cst_17 = arith.constant 1.06140542 : f32
    %27 = vector.broadcast %cst_17 : f32 to vector<4x384xf32>
    %28 = arith.mulf %27, %26 : vector<4x384xf32>
    %cst_18 = arith.constant -1.45315206 : f32
    %29 = vector.broadcast %cst_18 : f32 to vector<4x384xf32>
    %30 = arith.addf %28, %29 : vector<4x384xf32>
    %31 = arith.mulf %30, %26 : vector<4x384xf32>
    %cst_19 = arith.constant 1.42141378 : f32
    %32 = vector.broadcast %cst_19 : f32 to vector<4x384xf32>
    %33 = arith.addf %31, %32 : vector<4x384xf32>
    %34 = arith.mulf %33, %26 : vector<4x384xf32>
    %cst_20 = arith.constant -0.284496725 : f32
    %35 = vector.broadcast %cst_20 : f32 to vector<4x384xf32>
    %36 = arith.addf %34, %35 : vector<4x384xf32>
    %37 = arith.mulf %36, %26 : vector<4x384xf32>
    %cst_21 = arith.constant 0.254829586 : f32
    %38 = vector.broadcast %cst_21 : f32 to vector<4x384xf32>
    %39 = arith.addf %37, %38 : vector<4x384xf32>
    %40 = arith.mulf %39, %26 : vector<4x384xf32>
    %41 = arith.mulf %17, %17 : vector<4x384xf32>
    %cst_22 = arith.constant 0.000000e+00 : f32
    %42 = vector.broadcast %cst_22 : f32 to vector<4x384xf32>
    %43 = arith.subf %42, %41 : vector<4x384xf32>
    %44 = math.exp %43 : vector<4x384xf32>
    %45 = arith.mulf %40, %44 : vector<4x384xf32>
    %cst_23 = arith.constant 1.000000e+00 : f32
    %46 = vector.broadcast %cst_23 : f32 to vector<4x384xf32>
    %47 = arith.subf %46, %45 : vector<4x384xf32>
    %cst_24 = arith.constant 0.000000e+00 : f32
    %48 = vector.broadcast %cst_24 : f32 to vector<4x384xf32>
    %49 = arith.cmpf olt, %16, %48 : vector<4x384xf32>
    %cst_25 = arith.constant 0.000000e+00 : f32
    %50 = vector.broadcast %cst_25 : f32 to vector<4x384xf32>
    %51 = arith.subf %50, %47 : vector<4x384xf32>
    %52 = arith.select %49, %51, %47 : vector<4x384xi1>, vector<4x384xf32>
    %cst_26 = arith.constant 1.000000e+00 : f32
    %53 = vector.broadcast %cst_26 : f32 to vector<4x384xf32>
    %54 = arith.addf %53, %52 : vector<4x384xf32>
    %55 = arith.mulf %14, %54 : vector<4x384xf32>
    %56 = vector.extract_strided_slice %55 {offsets = [0, 128], sizes = [4, 128], strides = [1, 1]} : vector<4x384xf32> to vector<4x128xf32>
    %c0_27 = arith.constant 0 : index
    %c0_28 = arith.constant 0 : index
    %c0_29 = arith.constant 0 : index
    %c0_30 = arith.constant 0 : index
    %57 = vector.load %arg11[%c0_27, %c0_28, %c0_29, %c0_30] : memref<1x2x4x128xf32, #tpu.memory_space<vmem>>, vector<1x1x4x128xf32>
    %58 = vector.shape_cast %57 : vector<1x1x4x128xf32> to vector<4x128xf32>
    %59 = vector.shape_cast %56 : vector<4x128xf32> to vector<1x1x4x128xf32>
    tpu.vector_store %arg11[%c0_27, %c0_28, %c0_29, %c0_30], %59 {strides = array<i32>} : memref<1x2x4x128xf32, #tpu.memory_space<vmem>>, vector<1x1x4x128xf32>,
    %60 = tpu.iota {dimensions = array<i32: 1>} : vector<1x128xi32>
    %61 = vector.broadcast %7 : i32 to vector<1x128xi32>
    %62 = arith.addi %61, %60 : vector<1x128xi32>
    %c0_31 = arith.constant 0 : index
    %c0_32 = arith.constant 0 : index
    %63 = vector.load %arg6[%c0_31, %c0_32] : memref<1x128xi32, #tpu.memory_space<vmem>>, vector<1x128xi32>
    %c0_33 = arith.constant 0 : index
    %c0_34 = arith.constant 0 : index
    %c0_35 = arith.constant 0 : index
    %64 = vector.load %arg9[%c0_33, %c0_34, %c0_35] : memref<9x4x1xf32, #tpu.memory_space<vmem>>, vector<9x4x1xf32>
    %cst_36 = arith.constant 0.000000e+00 : f32
    %65 = vector.broadcast %cst_36 : f32 to vector<4x128xf32>
    %c273_i32 = arith.constant 273 : i32
    %66 = tpu.dynamic_rotate %55 by %c273_i32 dim 1 : vector<4x384xf32>, i32 -> vector<4x384xf32>
    %67 = vector.extract_strided_slice %66 {offsets = [0, 0], sizes = [4, 128], strides = [1, 1]} : vector<4x384xf32> to vector<4x128xf32>
    %c16_i32 = arith.constant 16 : i32
    %68 = vector.broadcast %c16_i32 : i32 to vector<1x128xi32>
    %69 = arith.cmpi sge, %62, %68 : vector<1x128xi32>
    %c1_i32 = arith.constant 1 : i32
    %70 = vector.broadcast %c1_i32 : i32 to vector<1x128xi32>
    %71 = arith.cmpi sge, %63, %70 : vector<1x128xi32>
    %72 = arith.andi %69, %71 : vector<1x128xi1>
    %cst_37 = arith.constant 0.000000e+00 : f32
    %73 = vector.shape_cast %72 : vector<1x128xi1> to vector<1x128xi1>
    %74 = vector.broadcast %73 : vector<1x128xi1> to vector<4x128xi1>
    %75 = vector.broadcast %cst_37 : f32 to vector<4x128xf32>
    %76 = arith.select %74, %67, %75 : vector<4x128xi1>, vector<4x128xf32>
    %77 = vector.extract_strided_slice %64 {offsets = [0, 0, 0], sizes = [1, 4, 1], strides = [1, 1, 1]} : vector<9x4x1xf32> to vector<1x4x1xf32>
    %78 = vector.shape_cast %77 : vector<1x4x1xf32> to vector<4x1xf32>
    %79 = vector.broadcast %78 : vector<4x1xf32> to vector<4x128xf32>
    %80 = arith.mulf %76, %79 : vector<4x128xf32>
    %81 = arith.addf %65, %80 : vector<4x128xf32>
    %c272_i32 = arith.constant 272 : i32
    %82 = tpu.dynamic_rotate %55 by %c272_i32 dim 1 : vector<4x384xf32>, i32 -> vector<4x384xf32>
    %83 = vector.extract_strided_slice %82 {offsets = [0, 0], sizes = [4, 128], strides = [1, 1]} : vector<4x384xf32> to vector<4x128xf32>
    %c16_i32_38 = arith.constant 16 : i32
    %84 = vector.broadcast %c16_i32_38 : i32 to vector<1x128xi32>
    %85 = arith.cmpi sge, %62, %84 : vector<1x128xi32>
    %cst_39 = arith.constant 0.000000e+00 : f32
    %86 = vector.shape_cast %85 : vector<1x128xi1> to vector<1x128xi1>
    %87 = vector.broadcast %86 : vector<1x128xi1> to vector<4x128xi1>
    %88 = vector.broadcast %cst_39 : f32 to vector<4x128xf32>
    %89 = arith.select %87, %83, %88 : vector<4x128xi1>, vector<4x128xf32>
    %90 = vector.extract_strided_slice %64 {offsets = [1, 0, 0], sizes = [1, 4, 1], strides = [1, 1, 1]} : vector<9x4x1xf32> to vector<1x4x1xf32>
    %91 = vector.shape_cast %90 : vector<1x4x1xf32> to vector<4x1xf32>
    %92 = vector.broadcast %91 : vector<4x1xf32> to vector<4x128xf32>
    %93 = arith.mulf %89, %92 : vector<4x128xf32>
    %94 = arith.addf %81, %93 : vector<4x128xf32>
    %c271_i32 = arith.constant 271 : i32
    %95 = tpu.dynamic_rotate %55 by %c271_i32 dim 1 : vector<4x384xf32>, i32 -> vector<4x384xf32>
    %96 = vector.extract_strided_slice %95 {offsets = [0, 0], sizes = [4, 128], strides = [1, 1]} : vector<4x384xf32> to vector<4x128xf32>
    %c16_i32_40 = arith.constant 16 : i32
    %97 = vector.broadcast %c16_i32_40 : i32 to vector<1x128xi32>
    %98 = arith.cmpi sge, %62, %97 : vector<1x128xi32>
    %c15_i32 = arith.constant 15 : i32
    %99 = vector.broadcast %c15_i32 : i32 to vector<1x128xi32>
    %100 = arith.cmpi slt, %63, %99 : vector<1x128xi32>
    %101 = arith.andi %98, %100 : vector<1x128xi1>
    %cst_41 = arith.constant 0.000000e+00 : f32
    %102 = vector.shape_cast %101 : vector<1x128xi1> to vector<1x128xi1>
    %103 = vector.broadcast %102 : vector<1x128xi1> to vector<4x128xi1>
    %104 = vector.broadcast %cst_41 : f32 to vector<4x128xf32>
    %105 = arith.select %103, %96, %104 : vector<4x128xi1>, vector<4x128xf32>
    %106 = vector.extract_strided_slice %64 {offsets = [2, 0, 0], sizes = [1, 4, 1], strides = [1, 1, 1]} : vector<9x4x1xf32> to vector<1x4x1xf32>
    %107 = vector.shape_cast %106 : vector<1x4x1xf32> to vector<4x1xf32>
    %108 = vector.broadcast %107 : vector<4x1xf32> to vector<4x128xf32>
    %109 = arith.mulf %105, %108 : vector<4x128xf32>
    %110 = arith.addf %94, %109 : vector<4x128xf32>
    %c257_i32 = arith.constant 257 : i32
    %111 = tpu.dynamic_rotate %55 by %c257_i32 dim 1 : vector<4x384xf32>, i32 -> vector<4x384xf32>
    %112 = vector.extract_strided_slice %111 {offsets = [0, 0], sizes = [4, 128], strides = [1, 1]} : vector<4x384xf32> to vector<4x128xf32>
    %c1_i32_42 = arith.constant 1 : i32
    %113 = vector.broadcast %c1_i32_42 : i32 to vector<1x128xi32>
    %114 = arith.cmpi sge, %63, %113 : vector<1x128xi32>
    %cst_43 = arith.constant 0.000000e+00 : f32
    %115 = vector.shape_cast %114 : vector<1x128xi1> to vector<1x128xi1>
    %116 = vector.broadcast %115 : vector<1x128xi1> to vector<4x128xi1>
    %117 = vector.broadcast %cst_43 : f32 to vector<4x128xf32>
    %118 = arith.select %116, %112, %117 : vector<4x128xi1>, vector<4x128xf32>
    %119 = vector.extract_strided_slice %64 {offsets = [3, 0, 0], sizes = [1, 4, 1], strides = [1, 1, 1]} : vector<9x4x1xf32> to vector<1x4x1xf32>
    %120 = vector.shape_cast %119 : vector<1x4x1xf32> to vector<4x1xf32>
    %121 = vector.broadcast %120 : vector<4x1xf32> to vector<4x128xf32>
    %122 = arith.mulf %118, %121 : vector<4x128xf32>
    %123 = arith.addf %110, %122 : vector<4x128xf32>
    %c256_i32 = arith.constant 256 : i32
    %124 = tpu.dynamic_rotate %55 by %c256_i32 dim 1 : vector<4x384xf32>, i32 -> vector<4x384xf32>
    %125 = vector.extract_strided_slice %124 {offsets = [0, 0], sizes = [4, 128], strides = [1, 1]} : vector<4x384xf32> to vector<4x128xf32>
    %126 = vector.extract_strided_slice %64 {offsets = [4, 0, 0], sizes = [1, 4, 1], strides = [1, 1, 1]} : vector<9x4x1xf32> to vector<1x4x1xf32>
    %127 = vector.shape_cast %126 : vector<1x4x1xf32> to vector<4x1xf32>
    %128 = vector.broadcast %127 : vector<4x1xf32> to vector<4x128xf32>
    %129 = arith.mulf %125, %128 : vector<4x128xf32>
    %130 = arith.addf %123, %129 : vector<4x128xf32>
    %c255_i32 = arith.constant 255 : i32
    %131 = tpu.dynamic_rotate %55 by %c255_i32 dim 1 : vector<4x384xf32>, i32 -> vector<4x384xf32>
    %132 = vector.extract_strided_slice %131 {offsets = [0, 0], sizes = [4, 128], strides = [1, 1]} : vector<4x384xf32> to vector<4x128xf32>
    %c15_i32_44 = arith.constant 15 : i32
    %133 = vector.broadcast %c15_i32_44 : i32 to vector<1x128xi32>
    %134 = arith.cmpi slt, %63, %133 : vector<1x128xi32>
    %cst_45 = arith.constant 0.000000e+00 : f32
    %135 = vector.shape_cast %134 : vector<1x128xi1> to vector<1x128xi1>
    %136 = vector.broadcast %135 : vector<1x128xi1> to vector<4x128xi1>
    %137 = vector.broadcast %cst_45 : f32 to vector<4x128xf32>
    %138 = arith.select %136, %132, %137 : vector<4x128xi1>, vector<4x128xf32>
    %139 = vector.extract_strided_slice %64 {offsets = [5, 0, 0], sizes = [1, 4, 1], strides = [1, 1, 1]} : vector<9x4x1xf32> to vector<1x4x1xf32>
    %140 = vector.shape_cast %139 : vector<1x4x1xf32> to vector<4x1xf32>
    %141 = vector.broadcast %140 : vector<4x1xf32> to vector<4x128xf32>
    %142 = arith.mulf %138, %141 : vector<4x128xf32>
    %143 = arith.addf %130, %142 : vector<4x128xf32>
    %c241_i32 = arith.constant 241 : i32
    %144 = tpu.dynamic_rotate %55 by %c241_i32 dim 1 : vector<4x384xf32>, i32 -> vector<4x384xf32>
    %145 = vector.extract_strided_slice %144 {offsets = [0, 0], sizes = [4, 128], strides = [1, 1]} : vector<4x384xf32> to vector<4x128xf32>
    %c240_i32 = arith.constant 240 : i32
    %146 = vector.broadcast %c240_i32 : i32 to vector<1x128xi32>
    %147 = arith.cmpi slt, %62, %146 : vector<1x128xi32>
    %c1_i32_46 = arith.constant 1 : i32
    %148 = vector.broadcast %c1_i32_46 : i32 to vector<1x128xi32>
    %149 = arith.cmpi sge, %63, %148 : vector<1x128xi32>
    %150 = arith.andi %147, %149 : vector<1x128xi1>
    %cst_47 = arith.constant 0.000000e+00 : f32
    %151 = vector.shape_cast %150 : vector<1x128xi1> to vector<1x128xi1>
    %152 = vector.broadcast %151 : vector<1x128xi1> to vector<4x128xi1>
    %153 = vector.broadcast %cst_47 : f32 to vector<4x128xf32>
    %154 = arith.select %152, %145, %153 : vector<4x128xi1>, vector<4x128xf32>
    %155 = vector.extract_strided_slice %64 {offsets = [6, 0, 0], sizes = [1, 4, 1], strides = [1, 1, 1]} : vector<9x4x1xf32> to vector<1x4x1xf32>
    %156 = vector.shape_cast %155 : vector<1x4x1xf32> to vector<4x1xf32>
    %157 = vector.broadcast %156 : vector<4x1xf32> to vector<4x128xf32>
    %158 = arith.mulf %154, %157 : vector<4x128xf32>
    %159 = arith.addf %143, %158 : vector<4x128xf32>
    %c240_i32_48 = arith.constant 240 : i32
    %160 = tpu.dynamic_rotate %55 by %c240_i32_48 dim 1 : vector<4x384xf32>, i32 -> vector<4x384xf32>
    %161 = vector.extract_strided_slice %160 {offsets = [0, 0], sizes = [4, 128], strides = [1, 1]} : vector<4x384xf32> to vector<4x128xf32>
    %c240_i32_49 = arith.constant 240 : i32
    %162 = vector.broadcast %c240_i32_49 : i32 to vector<1x128xi32>
    %163 = arith.cmpi slt, %62, %162 : vector<1x128xi32>
    %cst_50 = arith.constant 0.000000e+00 : f32
    %164 = vector.shape_cast %163 : vector<1x128xi1> to vector<1x128xi1>
    %165 = vector.broadcast %164 : vector<1x128xi1> to vector<4x128xi1>
    %166 = vector.broadcast %cst_50 : f32 to vector<4x128xf32>
    %167 = arith.select %165, %161, %166 : vector<4x128xi1>, vector<4x128xf32>
    %168 = vector.extract_strided_slice %64 {offsets = [7, 0, 0], sizes = [1, 4, 1], strides = [1, 1, 1]} : vector<9x4x1xf32> to vector<1x4x1xf32>
    %169 = vector.shape_cast %168 : vector<1x4x1xf32> to vector<4x1xf32>
    %170 = vector.broadcast %169 : vector<4x1xf32> to vector<4x128xf32>
    %171 = arith.mulf %167, %170 : vector<4x128xf32>
    %172 = arith.addf %159, %171 : vector<4x128xf32>
    %c239_i32 = arith.constant 239 : i32
    %173 = tpu.dynamic_rotate %55 by %c239_i32 dim 1 : vector<4x384xf32>, i32 -> vector<4x384xf32>
    %174 = vector.extract_strided_slice %173 {offsets = [0, 0], sizes = [4, 128], strides = [1, 1]} : vector<4x384xf32> to vector<4x128xf32>
    %c240_i32_51 = arith.constant 240 : i32
    %175 = vector.broadcast %c240_i32_51 : i32 to vector<1x128xi32>
    %176 = arith.cmpi slt, %62, %175 : vector<1x128xi32>
    %c15_i32_52 = arith.constant 15 : i32
    %177 = vector.broadcast %c15_i32_52 : i32 to vector<1x128xi32>
    %178 = arith.cmpi slt, %63, %177 : vector<1x128xi32>
    %179 = arith.andi %176, %178 : vector<1x128xi1>
    %cst_53 = arith.constant 0.000000e+00 : f32
    %180 = vector.shape_cast %179 : vector<1x128xi1> to vector<1x128xi1>
    %181 = vector.broadcast %180 : vector<1x128xi1> to vector<4x128xi1>
    %182 = vector.broadcast %cst_53 : f32 to vector<4x128xf32>
    %183 = arith.select %181, %174, %182 : vector<4x128xi1>, vector<4x128xf32>
    %184 = vector.extract_strided_slice %64 {offsets = [8, 0, 0], sizes = [1, 4, 1], strides = [1, 1, 1]} : vector<9x4x1xf32> to vector<1x4x1xf32>
    %185 = vector.shape_cast %184 : vector<1x4x1xf32> to vector<4x1xf32>
    %186 = vector.broadcast %185 : vector<4x1xf32> to vector<4x128xf32>
    %187 = arith.mulf %183, %186 : vector<4x128xf32>
    %188 = arith.addf %172, %187 : vector<4x128xf32>
    %c0_54 = arith.constant 0 : index
    %c0_55 = arith.constant 0 : index
    %189 = vector.load %arg10[%c0_54, %c0_55] : memref<4x1xf32, #tpu.memory_space<vmem>>, vector<4x1xf32>
    %190 = vector.broadcast %189 : vector<4x1xf32> to vector<4x128xf32>
    %191 = arith.addf %188, %190 : vector<4x128xf32>
    %cst_56 = arith.constant 5.000000e-01 : f32
    %192 = vector.broadcast %cst_56 : f32 to vector<4x128xf32>
    %193 = arith.mulf %192, %191 : vector<4x128xf32>
    %cst_57 = arith.constant 0.707106769 : f32
    %194 = vector.broadcast %cst_57 : f32 to vector<4x128xf32>
    %195 = arith.mulf %191, %194 : vector<4x128xf32>
    %196 = math.absf %195 : vector<4x128xf32>
    %cst_58 = arith.constant 0.327591091 : f32
    %197 = vector.broadcast %cst_58 : f32 to vector<4x128xf32>
    %198 = arith.mulf %197, %196 : vector<4x128xf32>
    %cst_59 = arith.constant 1.000000e+00 : f32
    %199 = vector.broadcast %cst_59 : f32 to vector<4x128xf32>
    %200 = arith.addf %199, %198 : vector<4x128xf32>
    %201 = tpu.reciprocal %200 {approx = true} : vector<4x128xf32> -> vector<4x128xf32>
    %202 = arith.mulf %200, %201 : vector<4x128xf32>
    %cst_60 = arith.constant 2.000000e+00 : f32
    %203 = vector.broadcast %cst_60 : f32 to vector<4x128xf32>
    %204 = arith.subf %203, %202 : vector<4x128xf32>
    %205 = arith.mulf %201, %204 : vector<4x128xf32>
    %cst_61 = arith.constant 1.06140542 : f32
    %206 = vector.broadcast %cst_61 : f32 to vector<4x128xf32>
    %207 = arith.mulf %206, %205 : vector<4x128xf32>
    %cst_62 = arith.constant -1.45315206 : f32
    %208 = vector.broadcast %cst_62 : f32 to vector<4x128xf32>
    %209 = arith.addf %207, %208 : vector<4x128xf32>
    %210 = arith.mulf %209, %205 : vector<4x128xf32>
    %cst_63 = arith.constant 1.42141378 : f32
    %211 = vector.broadcast %cst_63 : f32 to vector<4x128xf32>
    %212 = arith.addf %210, %211 : vector<4x128xf32>
    %213 = arith.mulf %212, %205 : vector<4x128xf32>
    %cst_64 = arith.constant -0.284496725 : f32
    %214 = vector.broadcast %cst_64 : f32 to vector<4x128xf32>
    %215 = arith.addf %213, %214 : vector<4x128xf32>
    %216 = arith.mulf %215, %205 : vector<4x128xf32>
    %cst_65 = arith.constant 0.254829586 : f32
    %217 = vector.broadcast %cst_65 : f32 to vector<4x128xf32>
    %218 = arith.addf %216, %217 : vector<4x128xf32>
    %219 = arith.mulf %218, %205 : vector<4x128xf32>
    %220 = arith.mulf %196, %196 : vector<4x128xf32>
    %cst_66 = arith.constant 0.000000e+00 : f32
    %221 = vector.broadcast %cst_66 : f32 to vector<4x128xf32>
    %222 = arith.subf %221, %220 : vector<4x128xf32>
    %223 = math.exp %222 : vector<4x128xf32>
    %224 = arith.mulf %219, %223 : vector<4x128xf32>
    %cst_67 = arith.constant 1.000000e+00 : f32
    %225 = vector.broadcast %cst_67 : f32 to vector<4x128xf32>
    %226 = arith.subf %225, %224 : vector<4x128xf32>
    %cst_68 = arith.constant 0.000000e+00 : f32
    %227 = vector.broadcast %cst_68 : f32 to vector<4x128xf32>
    %228 = arith.cmpf olt, %195, %227 : vector<4x128xf32>
    %cst_69 = arith.constant 0.000000e+00 : f32
    %229 = vector.broadcast %cst_69 : f32 to vector<4x128xf32>
    %230 = arith.subf %229, %226 : vector<4x128xf32>
    %231 = arith.select %228, %230, %226 : vector<4x128xi1>, vector<4x128xf32>
    %cst_70 = arith.constant 1.000000e+00 : f32
    %232 = vector.broadcast %cst_70 : f32 to vector<4x128xf32>
    %233 = arith.addf %232, %231 : vector<4x128xf32>
    %234 = arith.mulf %193, %233 : vector<4x128xf32>
    %c0_71 = arith.constant 0 : index
    %c1 = arith.constant 1 : index
    %c0_72 = arith.constant 0 : index
    %c0_73 = arith.constant 0 : index
    %235 = vector.load %arg11[%c0_71, %c1, %c0_72, %c0_73] : memref<1x2x4x128xf32, #tpu.memory_space<vmem>>, vector<1x1x4x128xf32>
    %236 = vector.shape_cast %235 : vector<1x1x4x128xf32> to vector<4x128xf32>
    %237 = vector.shape_cast %234 : vector<4x128xf32> to vector<1x1x4x128xf32>
    tpu.vector_store %arg11[%c0_71, %c1, %c0_72, %c0_73], %237 {strides = array<i32>} : memref<1x2x4x128xf32, #tpu.memory_space<vmem>>, vector<1x1x4x128xf32>,
    return
  }
  func.func @transform_0(%arg0: i32, %arg1: i32, %arg2: i32) -> (i32, i32, i32) {
    %c1_i32 = arith.constant 1 : i32
    %0 = arith.subi %arg2, %c1_i32 : i32
    %c0_i32 = arith.constant 0 : i32
    %1 = arith.maxsi %0, %c0_i32 : i32
    %c0_i32_0 = arith.constant 0 : i32
    %c0_i32_1 = arith.constant 0 : i32
    return %arg0, %c0_i32_0, %1 : i32, i32, i32
  }
  func.func @transform_1(%arg0: i32, %arg1: i32, %arg2: i32) -> (i32, i32, i32) {
    %c0_i32 = arith.constant 0 : i32
    %c0_i32_0 = arith.constant 0 : i32
    return %arg0, %c0_i32, %arg2 : i32, i32, i32
  }
  func.func @transform_2(%arg0: i32, %arg1: i32, %arg2: i32) -> (i32, i32, i32) {
    %c1_i32 = arith.constant 1 : i32
    %0 = arith.addi %arg2, %c1_i32 : i32
    %c1_i32_0 = arith.constant 1 : i32
    %1 = arith.minsi %0, %c1_i32_0 : i32
    %c0_i32 = arith.constant 0 : i32
    %c0_i32_1 = arith.constant 0 : i32
    return %arg0, %c0_i32, %1 : i32, i32, i32
  }
  func.func @transform_3(%arg0: i32, %arg1: i32, %arg2: i32) -> (i32, i32) {
    %c0_i32 = arith.constant 0 : i32
    %c0_i32_0 = arith.constant 0 : i32
    return %c0_i32, %arg2 : i32, i32
  }
  func.func @transform_4(%arg0: i32, %arg1: i32, %arg2: i32) -> (i32, i32) {
    %c0_i32 = arith.constant 0 : i32
    %c0_i32_0 = arith.constant 0 : i32
    return %arg1, %c0_i32 : i32, i32
  }
  func.func @transform_5(%arg0: i32, %arg1: i32, %arg2: i32) -> (i32, i32) {
    %c0_i32 = arith.constant 0 : i32
    %c0_i32_0 = arith.constant 0 : i32
    return %arg1, %c0_i32 : i32, i32
  }
  func.func @transform_6(%arg0: i32, %arg1: i32, %arg2: i32) -> (i32, i32, i32) {
    %c0_i32 = arith.constant 0 : i32
    %c0_i32_0 = arith.constant 0 : i32
    %c0_i32_1 = arith.constant 0 : i32
    return %c0_i32, %arg1, %c0_i32_0 : i32, i32, i32
  }
  func.func @transform_7(%arg0: i32, %arg1: i32, %arg2: i32) -> (i32, i32) {
    %c0_i32 = arith.constant 0 : i32
    %c0_i32_0 = arith.constant 0 : i32
    return %arg1, %c0_i32 : i32, i32
  }
  func.func @transform_8(%arg0: i32, %arg1: i32, %arg2: i32) -> (i32, i32, i32, i32) {
    %c0_i32 = arith.constant 0 : i32
    %c0_i32_0 = arith.constant 0 : i32
    return %arg0, %c0_i32, %arg1, %arg2 : i32, i32, i32, i32
  }
}

</mosaic_0001>

<llo_original>
// kernel: tpu_custom_call.1
$region0: #{tpu_custom_call.1}
  #allocation0 [shape = 'u32[]', space=smem, size = 0x4, offset = 0x4, fixed_abs, tag = 'smem constant byte address 0x4 - core index']
  #allocation1 [shape = 'u32[144,128]{1,0:T(1,128)}', space=vmem, size = 0x12000, scoped, tag = 'internal scratch']
  %s0 = inlined_call_operand.vmem [shape: f32[2,4,256], index: 0, kind: input, shape index: {}]
  %s1 = inlined_call_operand.vmem [shape: f32[2,4,256], index: 1, kind: input, shape index: {}]
  %s2 = inlined_call_operand.vmem [shape: f32[2,4,256], index: 2, kind: input, shape index: {}]
  %s3 = inlined_call_operand.vmem [shape: s32[1,256], index: 3, kind: input, shape index: {}]
  %s4 = inlined_call_operand.vmem [shape: f32[4,4], index: 4, kind: input, shape index: {}]
  %s5 = inlined_call_operand.vmem [shape: f32[4,1], index: 5, kind: input, shape index: {}]
  %s6 = inlined_call_operand.vmem [shape: f32[9,4,1], index: 6, kind: input, shape index: {}]
  %s7 = inlined_call_operand.vmem [shape: f32[4,1], index: 7, kind: input, shape index: {}]
  %s8 = inlined_call_operand.hbm [shape: f32[2,2,4,256], index: 8, kind: output, shape index: {}]
  %s9 = sld [smem:[#allocation0]]
  $region65: #{tpu_custom_call.1} parent=0
    _
  %s11 = ssub.s32 1, %s9
  %s12 = scalar_select 0, %s11, %s9
  $region1: #{tpu_custom_call.1} parent=0
    #allocation2 [shape = 'u8[8192]{0}', space=vmem, size = 0x2000, scoped, tag = 'output window, operand 0']
    #allocation3 [shape = 's32[2]{0}', space=sflag, size = 0x8, scoped, tag = 'scoped memory for tpu_custom_call.1']
    %13 = vsyncpa [#allocation3], 0
    %s14 = scalar_lea.sflag [#allocation3], 1
    %15 = vsyncpa %s14, 0
    loop: start=0, step=1, limit=6
    $region2: #{tpu_custom_call.1} parent=1 // loop_pre_header
      _
    $region3: #{tpu_custom_call.1} parent=1 // loop_header
      %s17 = sphi 0, %s21
      %p18 = scmp.ge.s32.totalorder %s17, 6
      %s24 = sphi 0, %s43
      %s25 = sphi 0, %s39
      %s26 = sphi 0, %s35
      %s27 = sphi 0, %s24
      %s28 = sphi 0, %s25
      %s29 = sphi 0, %s26
      %s30 = sphi 0, %s27
      %s31 = sphi 0, %s28
      %s32 = sphi 0, %s29
      %s54 = sphi 0, %s56
      %s57 = sphi 0, %s54
      %s58 = sphi 0, %s57
      %s74 = sphi 0, %s58
      %s82 = sphi 0, %s84
      %s85 = sphi 0, %s82
      %s86 = sphi 0, %s85
      %s102 = sphi 0, %s86
      %s116 = sphi 0, %s118
      %s119 = sphi 0, %s116
      %s120 = sphi 0, %s119
      %s136 = sphi 0, %s120
      %s142 = sphi 0, %s144
      %s145 = sphi 0, %s142
      %s146 = sphi 0, %s145
      %s162 = sphi 0, %s146
      %s168 = sphi 0, %s170
      %s171 = sphi 0, %s168
      %s172 = sphi 0, %s171
      %s188 = sphi 0, %s172
      %s194 = sphi 0, %s196
      %s197 = sphi 0, %s194
      %s198 = sphi 0, %s197
      %s214 = sphi 0, %s198
      %s220 = sphi 0, %s222
      %s223 = sphi 0, %s220
      %s224 = sphi 0, %s223
      %s240 = sphi 0, %s224
      %s246 = sphi 0, %s248
      %s249 = sphi 0, %s246
      %s250 = sphi 0, %s249
      %s266 = sphi 0, %s250
      %s276 = sphi 0, %s278
      %s279 = sphi 0, %s276
      %s280 = sphi 0, %s279
      %s296 = sphi 0, %s280
    $region4: #{tpu_custom_call.1} parent=1 // loop_header_branch
      %20 = sbr.rel (%p18) target = $region8
    $region5: #{tpu_custom_call.1} parent=1 // loop_body
      %s22 = ssub.s32 %s17, 1
      %s23 = ssub.s32 %s17, 2
      %s33 = sadd.s32 1, %s26
      %p34 = scmp.ge.s32.totalorder %s33, 2
      %s35 = scalar_select %p34, 0, %s33
      %s36 = sadd.s32 1, %s25
      %s37 = scalar_select %p34, %s36, %s25
      %p38 = scmp.ge.s32.totalorder %s37, 1
      %s39 = scalar_select %p38, 0, %s37
      %s40 = sadd.s32 1, %s24
      %s41 = scalar_select %p38, %s40, %s24
      %p42 = scmp.ge.s32.totalorder %s41, 2
      %s43 = scalar_select %p42, 0, %s41
      %s44 = ssub.s32 %s26, 1
      %p45 = scmp.gt.s32.totalorder %s44, 0
      %s46 = scalar_select %p45, %s44, 0
      %s47 = ssub.s32 %s35, 1
      %p48 = scmp.gt.s32.totalorder %s47, 0
      %s49 = scalar_select %p48, %s47, 0
      %s50 = ssub.s32 %s24, %s43
      %s51 = ssub.s32 %s46, %s49
      %s52 = sor.u32 %s50, %s51
      %p53 = scmp.eq.s32.totalorder %s52, 0
      %s55 = sadd.s32 %s54, 1
      %s56 = scalar_select %p53, %s54, %s55
      %p59 = pneg %p53
      %p60 = scmp.eq.s32.totalorder %s17, 3
      %p61 = por %p59, %p60
      %p62 = scmp.ne.s32.totalorder %s54, %s57
      %p63 = scmp.eq.s32.totalorder %s17, 0
      %p64 = por %p62, %p63
      %p65 = scmp.ne.s32.totalorder %s54, %s57
      %p66 = scmp.eq.s32.totalorder %s22, 3
      %p67 = por %p65, %p66
      %p68 = scmp.ne.s32.totalorder %s57, %s58
      %p69 = scmp.eq.s32.totalorder %s22, 0
      %p70 = por %p68, %p69
      %p71 = scmp.ne.s32.totalorder %s57, %s58
      %p72 = scmp.eq.s32.totalorder %s23, 3
      %p73 = por %p71, %p72
      %p75 = scmp.ne.s32.totalorder %s58, %s74
      %p76 = scmp.eq.s32.totalorder %s23, 0
      %p77 = por %p75, %p76
      %s78 = ssub.s32 %s24, %s43
      %s79 = ssub.s32 %s26, %s35
      %s80 = sor.u32 %s78, %s79
      %p81 = scmp.eq.s32.totalorder %s80, 0
      %s83 = sadd.s32 %s82, 1
      %s84 = scalar_select %p81, %s82, %s83
      %p87 = pneg %p81
      %p88 = scmp.eq.s32.totalorder %s17, 3
      %p89 = por %p87, %p88
      %p90 = scmp.ne.s32.totalorder %s82, %s85
      %p91 = scmp.eq.s32.totalorder %s17, 0
      %p92 = por %p90, %p91
      %p93 = scmp.ne.s32.totalorder %s82, %s85
      %p94 = scmp.eq.s32.totalorder %s22, 3
      %p95 = por %p93, %p94
      %p96 = scmp.ne.s32.totalorder %s85, %s86
      %p97 = scmp.eq.s32.totalorder %s22, 0
      %p98 = por %p96, %p97
      %p99 = scmp.ne.s32.totalorder %s85, %s86
      %p100 = scmp.eq.s32.totalorder %s23, 3
      %p101 = por %p99, %p100
      %p103 = scmp.ne.s32.totalorder %s86, %s102
      %p104 = scmp.eq.s32.totalorder %s23, 0
      %p105 = por %p103, %p104
      %s106 = sadd.s32 %s26, 1
      %p107 = scmp.lt.s32.totalorder %s106, 1
      %s108 = scalar_select %p107, %s106, 1
      %s109 = sadd.s32 %s35, 1
      %p110 = scmp.lt.s32.totalorder %s109, 1
      %s111 = scalar_select %p110, %s109, 1
      %s112 = ssub.s32 %s24, %s43
      %s113 = ssub.s32 %s108, %s111
      %s114 = sor.u32 %s112, %s113
      %p115 = scmp.eq.s32.totalorder %s114, 0
      %s117 = sadd.s32 %s116, 1
      %s118 = scalar_select %p115, %s116, %s117
      %p121 = pneg %p115
      %p122 = scmp.eq.s32.totalorder %s17, 3
      %p123 = por %p121, %p122
      %p124 = scmp.ne.s32.totalorder %s116, %s119
      %p125 = scmp.eq.s32.totalorder %s17, 0
      %p126 = por %p124, %p125
      %p127 = scmp.ne.s32.totalorder %s116, %s119
      %p128 = scmp.eq.s32.totalorder %s22, 3
      %p129 = por %p127, %p128
      %p130 = scmp.ne.s32.totalorder %s119, %s120
      %p131 = scmp.eq.s32.totalorder %s22, 0
      %p132 = por %p130, %p131
      %p133 = scmp.ne.s32.totalorder %s119, %s120
      %p134 = scmp.eq.s32.totalorder %s23, 3
      %p135 = por %p133, %p134
      %p137 = scmp.ne.s32.totalorder %s120, %s136
      %p138 = scmp.eq.s32.totalorder %s23, 0
      %p139 = por %p137, %p138
      %s140 = ssub.s32 %s26, %s35
      %p141 = scmp.eq.s32.totalorder %s140, 0
      %s143 = sadd.s32 %s142, 1
      %s144 = scalar_select %p141, %s142, %s143
      %p147 = pneg %p141
      %p148 = scmp.eq.s32.totalorder %s17, 3
      %p149 = por %p147, %p148
      %p150 = scmp.ne.s32.totalorder %s142, %s145
      %p151 = scmp.eq.s32.totalorder %s17, 0
      %p152 = por %p150, %p151
      %p153 = scmp.ne.s32.totalorder %s142, %s145
      %p154 = scmp.eq.s32.totalorder %s22, 3
      %p155 = por %p153, %p154
      %p156 = scmp.ne.s32.totalorder %s145, %s146
      %p157 = scmp.eq.s32.totalorder %s22, 0
      %p158 = por %p156, %p157
      %p159 = scmp.ne.s32.totalorder %s145, %s146
      %p160 = scmp.eq.s32.totalorder %s23, 3
      %p161 = por %p159, %p160
      %p163 = scmp.ne.s32.totalorder %s146, %s162
      %p164 = scmp.eq.s32.totalorder %s23, 0
      %p165 = por %p163, %p164
      %s166 = ssub.s32 %s25, %s39
      %p167 = scmp.eq.s32.totalorder %s166, 0
      %s169 = sadd.s32 %s168, 1
      %s170 = scalar_select %p167, %s168, %s169
      %p173 = pneg %p167
      %p174 = scmp.eq.s32.totalorder %s17, 3
      %p175 = por %p173, %p174
      %p176 = scmp.ne.s32.totalorder %s168, %s171
      %p177 = scmp.eq.s32.totalorder %s17, 0
      %p178 = por %p176, %p177
      %p179 = scmp.ne.s32.totalorder %s168, %s171
      %p180 = scmp.eq.s32.totalorder %s22, 3
      %p181 = por %p179, %p180
      %p182 = scmp.ne.s32.totalorder %s171, %s172
      %p183 = scmp.eq.s32.totalorder %s22, 0
      %p184 = por %p182, %p183
      %p185 = scmp.ne.s32.totalorder %s171, %s172
      %p186 = scmp.eq.s32.totalorder %s23, 3
      %p187 = por %p185, %p186
      %p189 = scmp.ne.s32.totalorder %s172, %s188
      %p190 = scmp.eq.s32.totalorder %s23, 0
      %p191 = por %p189, %p190
      %s192 = ssub.s32 %s25, %s39
      %p193 = scmp.eq.s32.totalorder %s192, 0
      %s195 = sadd.s32 %s194, 1
      %s196 = scalar_select %p193, %s194, %s195
      %p199 = pneg %p193
      %p200 = scmp.eq.s32.totalorder %s17, 3
      %p201 = por %p199, %p200
      %p202 = scmp.ne.s32.totalorder %s194, %s197
      %p203 = scmp.eq.s32.totalorder %s17, 0
      %p204 = por %p202, %p203
      %p205 = scmp.ne.s32.totalorder %s194, %s197
      %p206 = scmp.eq.s32.totalorder %s22, 3
      %p207 = por %p205, %p206
      %p208 = scmp.ne.s32.totalorder %s197, %s198
      %p209 = scmp.eq.s32.totalorder %s22, 0
      %p210 = por %p208, %p209
      %p211 = scmp.ne.s32.totalorder %s197, %s198
      %p212 = scmp.eq.s32.totalorder %s23, 3
      %p213 = por %p211, %p212
      %p215 = scmp.ne.s32.totalorder %s198, %s214
      %p216 = scmp.eq.s32.totalorder %s23, 0
      %p217 = por %p215, %p216
      %s218 = ssub.s32 %s25, %s39
      %p219 = scmp.eq.s32.totalorder %s218, 0
      %s221 = sadd.s32 %s220, 1
      %s222 = scalar_select %p219, %s220, %s221
      %p225 = pneg %p219
      %p226 = scmp.eq.s32.totalorder %s17, 3
      %p227 = por %p225, %p226
      %p228 = scmp.ne.s32.totalorder %s220, %s223
      %p229 = scmp.eq.s32.totalorder %s17, 0
      %p230 = por %p228, %p229
      %p231 = scmp.ne.s32.totalorder %s220, %s223
      %p232 = scmp.eq.s32.totalorder %s22, 3
      %p233 = por %p231, %p232
      %p234 = scmp.ne.s32.totalorder %s223, %s224
      %p235 = scmp.eq.s32.totalorder %s22, 0
      %p236 = por %p234, %p235
      %p237 = scmp.ne.s32.totalorder %s223, %s224
      %p238 = scmp.eq.s32.totalorder %s23, 3
      %p239 = por %p237, %p238
      %p241 = scmp.ne.s32.totalorder %s224, %s240
      %p242 = scmp.eq.s32.totalorder %s23, 0
      %p243 = por %p241, %p242
      %s244 = ssub.s32 %s25, %s39
      %p245 = scmp.eq.s32.totalorder %s244, 0
      %s247 = sadd.s32 %s246, 1
      %s248 = scalar_select %p245, %s246, %s247
      %p251 = pneg %p245
      %p252 = scmp.eq.s32.totalorder %s17, 3
      %p253 = por %p251, %p252
      %p254 = scmp.ne.s32.totalorder %s246, %s249
      %p255 = scmp.eq.s32.totalorder %s17, 0
      %p256 = por %p254, %p255
      %p257 = scmp.ne.s32.totalorder %s246, %s249
      %p258 = scmp.eq.s32.totalorder %s22, 3
      %p259 = por %p257, %p258
      %p260 = scmp.ne.s32.totalorder %s249, %s250
      %p261 = scmp.eq.s32.totalorder %s22, 0
      %p262 = por %p260, %p261
      %p263 = scmp.ne.s32.totalorder %s249, %s250
      %p264 = scmp.eq.s32.totalorder %s23, 3
      %p265 = por %p263, %p264
      %p267 = scmp.ne.s32.totalorder %s250, %s266
      %p268 = scmp.eq.s32.totalorder %s23, 0
      %p269 = por %p267, %p268
      %s270 = ssub.s32 %s24, %s43
      %s271 = ssub.s32 %s25, %s39
      %s272 = sor.u32 %s270, %s271
      %s273 = ssub.s32 %s26, %s35
      %s274 = sor.u32 %s272, %s273
      %p275 = scmp.eq.s32.totalorder %s274, 0
      %s277 = sadd.s32 %s276, 1
      %s278 = scalar_select %p275, %s276, %s277
      %p281 = pneg %p275
      %p282 = scmp.eq.s32.totalorder %s17, 3
      %p283 = por %p281, %p282
      %p284 = scmp.ne.s32.totalorder %s276, %s279
      %p285 = scmp.eq.s32.totalorder %s17, 0
      %p286 = por %p284, %p285
      %p287 = scmp.ne.s32.totalorder %s276, %s279
      %p288 = scmp.eq.s32.totalorder %s22, 3
      %p289 = por %p287, %p288
      %p290 = scmp.ne.s32.totalorder %s279, %s280
      %p291 = scmp.eq.s32.totalorder %s22, 0
      %p292 = por %p290, %p291
      %p293 = scmp.ne.s32.totalorder %s279, %s280
      %p294 = scmp.eq.s32.totalorder %s23, 3
      %p295 = por %p293, %p294
      %p297 = scmp.ne.s32.totalorder %s280, %s296
      %p298 = scmp.eq.s32.totalorder %s23, 0
      %p299 = por %p297, %p298
      %p300 = scmp.le.s32.totalorder 1, %s17
      %p301 = scmp.lt.s32.totalorder %s17, 5
      %p302 = pnand %p300, %p301
      %p303 = pneg %p302
      // Predicated region
      $region9: #{tpu_custom_call.1} parent=5 // pred_check
        _
      $region10: #{tpu_custom_call.1} parent=5 // pred_check_branch
        %305 = sbr.rel (%p302) target = $region12
      $region11: #{tpu_custom_call.1} parent=5 // pred_region
        %s306 = ssub.s32 %s17, 1
        // Predicated region
        $region13: #{tpu_custom_call.1} parent=11 // pred_check
          %p307 = pneg %p184
        $region14: #{tpu_custom_call.1} parent=11 // pred_check_branch
          %309 = sbr.rel (%p307) target = $region16
        $region15: #{tpu_custom_call.1} parent=11 // pred_region
          %p310 = scmp.lt.s32.totalorder %s28, 0
          %s311 = scalar_select %p310, %s28, 0
          %s312 = smul.addr %s311, 4
          %s313 = scalar_lea.vmem %s4, %s312
        $region16: #{tpu_custom_call.1} parent=11 // pred_fallthru
          _
        // Predicated region
        $region17: #{tpu_custom_call.1} parent=11 // pred_check
          %p314 = pneg %p210
        $region18: #{tpu_custom_call.1} parent=11 // pred_check_branch
          %316 = sbr.rel (%p314) target = $region20
        $region19: #{tpu_custom_call.1} parent=11 // pred_region
          %p317 = scmp.lt.s32.totalorder %s28, 0
          %s318 = scalar_select %p317, %s28, 0
          %s319 = smul.addr %s318, 4
          %s320 = scalar_lea.vmem %s5, %s319
        $region20: #{tpu_custom_call.1} parent=11 // pred_fallthru
          _
        // Predicated region
        $region21: #{tpu_custom_call.1} parent=11 // pred_check
          %p321 = pneg %p236
        $region22: #{tpu_custom_call.1} parent=11 // pred_check_branch
          %323 = sbr.rel (%p321) target = $region24
        $region23: #{tpu_custom_call.1} parent=11 // pred_region
          %p324 = scmp.lt.s32.totalorder %s28, 0
          %s325 = scalar_select %p324, %s28, 0
          %s326 = smul.addr %s325, 4
          %s327 = scalar_lea.vmem %s6, %s326
        $region24: #{tpu_custom_call.1} parent=11 // pred_fallthru
          _
        // Predicated region
        $region25: #{tpu_custom_call.1} parent=11 // pred_check
          %p328 = pneg %p262
        $region26: #{tpu_custom_call.1} parent=11 // pred_check_branch
          %330 = sbr.rel (%p328) target = $region28
        $region27: #{tpu_custom_call.1} parent=11 // pred_region
          %p331 = scmp.lt.s32.totalorder %s28, 0
          %s332 = scalar_select %p331, %s28, 0
          %s333 = smul.addr %s332, 4
          %s334 = scalar_lea.vmem %s7, %s333
        $region28: #{tpu_custom_call.1} parent=11 // pred_fallthru
          _
      $region12: #{tpu_custom_call.1} parent=5 // pred_fallthru
        _
      %p335 = scmp.lt.s32.totalorder %s17, 4
      // Predicated region
      $region29: #{tpu_custom_call.1} parent=5 // pred_check
        %p336 = pneg %p335
      $region30: #{tpu_custom_call.1} parent=5 // pred_check_branch
        %338 = sbr.rel (%p336) target = $region32
      $region31: #{tpu_custom_call.1} parent=5 // pred_region
        // Predicated region
        $region33: #{tpu_custom_call.1} parent=31 // pred_check
          %p339 = pneg %p64
        $region34: #{tpu_custom_call.1} parent=31 // pred_check_branch
          %341 = sbr.rel (%p339) target = $region36
        $region35: #{tpu_custom_call.1} parent=31 // pred_region
          %s342 = ssub.s32 %s26, 1
          %p343 = scmp.gt.s32.totalorder %s342, 0
          %s344 = scalar_select %p343, %s342, 0
          %p345 = scmp.lt.s32.totalorder %s24, 1
          %s346 = scalar_select %p345, %s24, 1
          %p347 = scmp.lt.s32.totalorder %s344, 1
          %s348 = scalar_select %p347, %s344, 1
          %s349 = smul.addr %s346, 2
          %s350 = sadd.s32 %s348, %s349
          %s351 = smul.addr %s350, 4
          %s352 = scalar_lea.vmem %s0, %s351
          %s353 = ssub.s32 %s26, 1
          %p354 = scmp.gt.s32.totalorder %s353, 0
          %s355 = scalar_select %p354, %s353, 0
        $region36: #{tpu_custom_call.1} parent=31 // pred_fallthru
          _
        // Predicated region
        $region37: #{tpu_custom_call.1} parent=31 // pred_check
          %p356 = pneg %p92
        $region38: #{tpu_custom_call.1} parent=31 // pred_check_branch
          %358 = sbr.rel (%p356) target = $region40
        $region39: #{tpu_custom_call.1} parent=31 // pred_region
          %p359 = scmp.lt.s32.totalorder %s24, 1
          %s360 = scalar_select %p359, %s24, 1
          %p361 = scmp.lt.s32.totalorder %s26, 1
          %s362 = scalar_select %p361, %s26, 1
          %s363 = smul.addr %s360, 2
          %s364 = sadd.s32 %s362, %s363
          %s365 = smul.addr %s364, 4
          %s366 = scalar_lea.vmem %s1, %s365
        $region40: #{tpu_custom_call.1} parent=31 // pred_fallthru
          _
        // Predicated region
        $region41: #{tpu_custom_call.1} parent=31 // pred_check
          %p367 = pneg %p126
        $region42: #{tpu_custom_call.1} parent=31 // pred_check_branch
          %369 = sbr.rel (%p367) target = $region44
        $region43: #{tpu_custom_call.1} parent=31 // pred_region
          %s370 = sadd.s32 %s26, 1
          %p371 = scmp.lt.s32.totalorder %s370, 1
          %s372 = scalar_select %p371, %s370, 1
          %p373 = scmp.lt.s32.totalorder %s24, 1
          %s374 = scalar_select %p373, %s24, 1
          %p375 = scmp.lt.s32.totalorder %s372, 1
          %s376 = scalar_select %p375, %s372, 1
          %s377 = smul.addr %s374, 2
          %s378 = sadd.s32 %s376, %s377
          %s379 = smul.addr %s378, 4
          %s380 = scalar_lea.vmem %s2, %s379
          %s381 = sadd.s32 %s26, 1
          %p382 = scmp.lt.s32.totalorder %s381, 1
          %s383 = scalar_select %p382, %s381, 1
        $region44: #{tpu_custom_call.1} parent=31 // pred_fallthru
          _
        // Predicated region
        $region45: #{tpu_custom_call.1} parent=31 // pred_check
          %p384 = pneg %p152
        $region46: #{tpu_custom_call.1} parent=31 // pred_check_branch
          %386 = sbr.rel (%p384) target = $region48
        $region47: #{tpu_custom_call.1} parent=31 // pred_region
          %p387 = scmp.lt.s32.totalorder %s26, 1
          %s388 = scalar_select %p387, %s26, 1
          %s389 = scalar_lea.vmem %s3, %s388
        $region48: #{tpu_custom_call.1} parent=31 // pred_fallthru
          _
      $region32: #{tpu_custom_call.1} parent=5 // pred_fallthru
        _
      %p390 = scmp.le.s32.totalorder 1, %s17
      %p391 = scmp.lt.s32.totalorder %s17, 5
      %p392 = pnand %p390, %p391
      %p393 = pneg %p392
      // Predicated region
      $region49: #{tpu_custom_call.1} parent=5 // pred_check
        _
      $region50: #{tpu_custom_call.1} parent=5 // pred_check_branch
        %395 = sbr.rel (%p392) target = $region52
      $region51: #{tpu_custom_call.1} parent=5 // pred_region
        %s396 = ssub.s32 %s17, 1
        %s397 = ssub.s32 %s29, 1
        %p398 = scmp.gt.s32.totalorder %s397, 0
        %s399 = scalar_select %p398, %s397, 0
        %p400 = scmp.lt.s32.totalorder %s27, 1
        %s401 = scalar_select %p400, %s27, 1
        %p402 = scmp.lt.s32.totalorder %s399, 1
        %s403 = scalar_select %p402, %s399, 1
        %s404 = smul.addr %s401, 2
        %s405 = sadd.s32 %s403, %s404
        %s406 = smul.addr %s405, 4
        %s407 = scalar_lea.vmem %s0, %s406
        %p408 = pneg %p70
        %p409 = pneg %p67
        %p410 = scmp.lt.s32.totalorder %s27, 1
        %s411 = scalar_select %p410, %s27, 1
        %p412 = scmp.lt.s32.totalorder %s29, 1
        %s413 = scalar_select %p412, %s29, 1
        %s414 = smul.addr %s411, 2
        %s415 = sadd.s32 %s413, %s414
        %s416 = smul.addr %s415, 4
        %s417 = scalar_lea.vmem %s1, %s416
        %p418 = pneg %p98
        %p419 = pneg %p95
        %s420 = sadd.s32 %s29, 1
        %p421 = scmp.lt.s32.totalorder %s420, 1
        %s422 = scalar_select %p421, %s420, 1
        %p423 = scmp.lt.s32.totalorder %s27, 1
        %s424 = scalar_select %p423, %s27, 1
        %p425 = scmp.lt.s32.totalorder %s422, 1
        %s426 = scalar_select %p425, %s422, 1
        %s427 = smul.addr %s424, 2
        %s428 = sadd.s32 %s426, %s427
        %s429 = smul.addr %s428, 4
        %s430 = scalar_lea.vmem %s2, %s429
        %p431 = pneg %p132
        %p432 = pneg %p129
        %p433 = scmp.lt.s32.totalorder %s29, 1
        %s434 = scalar_select %p433, %s29, 1
        %s435 = scalar_lea.vmem %s3, %s434
        %p436 = pneg %p158
        %p437 = pneg %p155
        %p438 = scmp.lt.s32.totalorder %s28, 0
        %s439 = scalar_select %p438, %s28, 0
        %s440 = smul.addr %s439, 4
        %s441 = scalar_lea.vmem %s4, %s440
        %p442 = pneg %p184
        %p443 = pneg %p181
        %p444 = scmp.lt.s32.totalorder %s28, 0
        %s445 = scalar_select %p444, %s28, 0
        %s446 = smul.addr %s445, 4
        %s447 = scalar_lea.vmem %s5, %s446
        %p448 = pneg %p210
        %p449 = pneg %p207
        %p450 = scmp.lt.s32.totalorder %s28, 0
        %s451 = scalar_select %p450, %s28, 0
        %s452 = smul.addr %s451, 4
        %s453 = scalar_lea.vmem %s6, %s452
        %p454 = pneg %p236
        %p455 = pneg %p233
        %p456 = scmp.lt.s32.totalorder %s28, 0
        %s457 = scalar_select %p456, %s28, 0
        %s458 = smul.addr %s457, 4
        %s459 = scalar_lea.vmem %s7, %s458
        %p460 = pneg %p262
        %p461 = pneg %p259
        %p462 = pneg %p292
        %p463 = pneg %p289
        %s464 = sand.u32 %s279, 1
        %s465 = scalar_lea.sflag [#allocation3], %s464
        %s466 = sand.u32 %s279, 1
        %s467 = smul.addr %s466, 8
        %s468 = scalar_lea.vmem [#allocation2], %s467
        %s469 = ssub.s32 %s29, 1
        %p470 = scmp.gt.s32.totalorder %s469, 0
        %s471 = scalar_select %p470, %s469, 0
        %p472 = scmp.lt.s32.totalorder %s27, 1
        %s473 = scalar_select %p472, %s27, 1
        %p474 = scmp.lt.s32.totalorder %s471, 1
        %s475 = scalar_select %p474, %s471, 1
        %s476 = smul.addr %s473, 2
        %s477 = sadd.s32 %s475, %s476
        %s478 = smul.addr %s477, 4
        %s479 = scalar_lea.vmem %s0, %s478
        %s480 = ssub.s32 %s29, 1
        %p481 = scmp.gt.s32.totalorder %s480, 0
        %s482 = scalar_select %p481, %s480, 0
        %p483 = scmp.lt.s32.totalorder %s27, 1
        %s484 = scalar_select %p483, %s27, 1
        %p485 = scmp.lt.s32.totalorder %s29, 1
        %s486 = scalar_select %p485, %s29, 1
        %s487 = smul.addr %s484, 2
        %s488 = sadd.s32 %s486, %s487
        %s489 = smul.addr %s488, 4
        %s490 = scalar_lea.vmem %s1, %s489
        %s491 = sadd.s32 %s29, 1
        %p492 = scmp.lt.s32.totalorder %s491, 1
        %s493 = scalar_select %p492, %s491, 1
        %p494 = scmp.lt.s32.totalorder %s27, 1
        %s495 = scalar_select %p494, %s27, 1
        %p496 = scmp.lt.s32.totalorder %s493, 1
        %s497 = scalar_select %p496, %s493, 1
        %s498 = smul.addr %s495, 2
        %s499 = sadd.s32 %s497, %s498
        %s500 = smul.addr %s499, 4
        %s501 = scalar_lea.vmem %s2, %s500
        %s502 = sadd.s32 %s29, 1
        %p503 = scmp.lt.s32.totalorder %s502, 1
        %s504 = scalar_select %p503, %s502, 1
        %p505 = scmp.lt.s32.totalorder %s29, 1
        %s506 = scalar_select %p505, %s29, 1
        %s507 = scalar_lea.vmem %s3, %s506
        %p508 = scmp.lt.s32.totalorder %s28, 0
        %s509 = scalar_select %p508, %s28, 0
        %s510 = smul.addr %s509, 4
        %s511 = scalar_lea.vmem %s4, %s510
        %p512 = scmp.lt.s32.totalorder %s28, 0
        %s513 = scalar_select %p512, %s28, 0
        %s514 = smul.addr %s513, 4
        %s515 = scalar_lea.vmem %s5, %s514
        %p516 = scmp.lt.s32.totalorder %s28, 0
        %s517 = scalar_select %p516, %s28, 0
        %s518 = smul.addr %s517, 4
        %s519 = scalar_lea.vmem %s6, %s518
        %p520 = scmp.lt.s32.totalorder %s28, 0
        %s521 = scalar_select %p520, %s28, 0
        %s522 = smul.addr %s521, 4
        %s523 = scalar_lea.vmem %s7, %s522
        %v524 = vld [vmem:[%s479] sm:$0xf]
        %v525 = vld [vmem:[%s490] sm:$0xf]
        %v526 = vld [vmem:[%s501] sm:$0xf]
        %s527 = smul.u32 %s29, 128
        %v528 = vld [vmem:[%s511] sm:$0xf]
        %v529 = vld [vmem:[%s515] sm:$0xf]
        %531 = vset.pattern.permute.xlu0 0
        %532 = vperm.xlu0 %531, %v529
        %v533 = vpop.permute.xlu0 %532
        %vm535 = vcmask 31744
        %v537 = vsel %vm535, %v528, 0
        %vm539 = vcmask 1043456
        %v541 = vsel %vm539, %v524, 0
        %v544 = vsel %vm539, %v525, 0
        %v547 = vsel %vm539, %v526, 0
        %549 = vmatprep.subr.mxu0 %v544
        %550 = vmatpush1.msra.mxu0 %v541
        %551 = vmatprep.subr.mxu0 0.0
        %552 = vmatpush1.msra.mxu0 0.0
        %553 = vmatprep.subr.mxu0 0.0
        %554 = vmatpush1.msra.mxu0 0.0
        %555 = vmatprep.subr.mxu0 0.0
        %556 = vmatpush1.msra.mxu0 0.0
        %557 = vmatprep.subr.mxu0 0.0
        %558 = vmatpush1.msra.mxu0 0.0
        %559 = vmatprep.subr.mxu0 0.0
        %560 = vmatpush1.msra.mxu0 0.0
        %561 = vmatprep.subr.mxu0 0.0
        %562 = vmatpush1.msra.mxu0 0.0
        %563 = vmatprep.subr.mxu0 0.0
        %564 = vmatpush1.msra.mxu0 0.0
        %565 = vmatprep.subr.mxu0 0.0
        %566 = vmatpush1.msra.mxu0 0.0
        %567 = vmatprep.subr.mxu0 0.0
        %568 = vmatpush1.msra.mxu0 0.0
        %569 = vmatprep.subr.mxu0 0.0
        %570 = vmatpush1.msra.mxu0 0.0
        %571 = vmatprep.subr.mxu0 0.0
        %572 = vmatpush1.msra.mxu0 0.0
        %573 = vmatprep.subr.mxu0 0.0
        %574 = vmatpush1.msra.mxu0 0.0
        %575 = vmatprep.subr.mxu0 0.0
        %576 = vmatpush1.msra.mxu0 0.0
        %577 = vmatprep.subr.mxu0 0.0
        %578 = vmatpush1.msra.mxu0 0.0
        %579 = vmatprep.subr.mxu0 0.0
        %580 = vmatpush1.msra.mxu0 0.0
        %581 = vmatprep.subr.mxu0 0.0
        %582 = vmatpush1.msra.mxu0 0.0
        %583 = vmatprep.subr.mxu0 0.0
        %584 = vmatpush1.msra.mxu0 0.0
        %585 = vmatprep.subr.mxu0 0.0
        %586 = vmatpush1.msra.mxu0 0.0
        %587 = vmatprep.subr.mxu0 0.0
        %588 = vmatpush1.msra.mxu0 0.0
        %589 = vmatprep.subr.mxu0 0.0
        %590 = vmatpush1.msra.mxu0 0.0
        %591 = vmatprep.subr.mxu0 0.0
        %592 = vmatpush1.msra.mxu0 0.0
        %593 = vmatprep.subr.mxu0 0.0
        %594 = vmatpush1.msra.mxu0 0.0
        %595 = vmatprep.subr.mxu0 0.0
        %596 = vmatpush1.msra.mxu0 0.0
        %597 = vmatprep.subr.mxu0 0.0
        %598 = vmatpush1.msra.mxu0 0.0
        %599 = vmatprep.subr.mxu0 0.0
        %600 = vmatpush1.msra.mxu0 0.0
        %601 = vmatprep.subr.mxu0 0.0
        %602 = vmatpush1.msra.mxu0 0.0
        %603 = vmatprep.subr.mxu0 0.0
        %604 = vmatpush1.msra.mxu0 0.0
        %605 = vmatprep.subr.mxu0 0.0
        %606 = vmatpush1.msra.mxu0 0.0
        %607 = vmatprep.subr.mxu0 0.0
        %608 = vmatpush1.msra.mxu0 0.0
        %609 = vmatprep.subr.mxu0 0.0
        %610 = vmatpush1.msra.mxu0 0.0
        %611 = vmatprep.subr.mxu0 0.0
        %612 = vmatpush1.msra.mxu0 0.0
        %613 = vmatprep.mubr.f32.mxu0 0.0
        %614 = vmatmul.mubr.f32.gmra.mrb[0].mxu0 %v537
        %v615 = vpop.f32.mrb[0].mxu0
        %v616 = vadd.f32 %v533, %v615
        %v617 = vpop.f32.mrb[0].mxu0
        %v618 = vadd.f32 %v533, %v617
        %619 = vdwg.mxu0
        %620 = vmatprep.subr.mxu0 0.0
        %621 = vmatpush1.msra.mxu0 %v547
        %622 = vmatprep.subr.mxu0 0.0
        %623 = vmatpush1.msra.mxu0 0.0
        %624 = vmatprep.subr.mxu0 0.0
        %625 = vmatpush1.msra.mxu0 0.0
        %626 = vmatprep.subr.mxu0 0.0
        %627 = vmatpush1.msra.mxu0 0.0
        %628 = vmatprep.subr.mxu0 0.0
        %629 = vmatpush1.msra.mxu0 0.0
        %630 = vmatprep.subr.mxu0 0.0
        %631 = vmatpush1.msra.mxu0 0.0
        %632 = vmatprep.subr.mxu0 0.0
        %633 = vmatpush1.msra.mxu0 0.0
        %634 = vmatprep.subr.mxu0 0.0
        %635 = vmatpush1.msra.mxu0 0.0
        %636 = vmatprep.subr.mxu0 0.0
        %637 = vmatpush1.msra.mxu0 0.0
        %638 = vmatprep.subr.mxu0 0.0
        %639 = vmatpush1.msra.mxu0 0.0
        %640 = vmatprep.subr.mxu0 0.0
        %641 = vmatpush1.msra.mxu0 0.0
        %642 = vmatprep.subr.mxu0 0.0
        %643 = vmatpush1.msra.mxu0 0.0
        %644 = vmatprep.subr.mxu0 0.0
        %645 = vmatpush1.msra.mxu0 0.0
        %646 = vmatprep.subr.mxu0 0.0
        %647 = vmatpush1.msra.mxu0 0.0
        %648 = vmatprep.subr.mxu0 0.0
        %649 = vmatpush1.msra.mxu0 0.0
        %650 = vmatprep.subr.mxu0 0.0
        %651 = vmatpush1.msra.mxu0 0.0
        %652 = vmatprep.subr.mxu0 0.0
        %653 = vmatpush1.msra.mxu0 0.0
        %654 = vmatprep.subr.mxu0 0.0
        %655 = vmatpush1.msra.mxu0 0.0
        %656 = vmatprep.subr.mxu0 0.0
        %657 = vmatpush1.msra.mxu0 0.0
        %658 = vmatprep.subr.mxu0 0.0
        %659 = vmatpush1.msra.mxu0 0.0
        %660 = vmatprep.subr.mxu0 0.0
        %661 = vmatpush1.msra.mxu0 0.0
        %662 = vmatprep.subr.mxu0 0.0
        %663 = vmatpush1.msra.mxu0 0.0
        %664 = vmatprep.subr.mxu0 0.0
        %665 = vmatpush1.msra.mxu0 0.0
        %666 = vmatprep.subr.mxu0 0.0
        %667 = vmatpush1.msra.mxu0 0.0
        %668 = vmatprep.subr.mxu0 0.0
        %669 = vmatpush1.msra.mxu0 0.0
        %670 = vmatprep.subr.mxu0 0.0
        %671 = vmatpush1.msra.mxu0 0.0
        %672 = vmatprep.subr.mxu0 0.0
        %673 = vmatpush1.msra.mxu0 0.0
        %674 = vmatprep.subr.mxu0 0.0
        %675 = vmatpush1.msra.mxu0 0.0
        %676 = vmatprep.subr.mxu0 0.0
        %677 = vmatpush1.msra.mxu0 0.0
        %678 = vmatprep.subr.mxu0 0.0
        %679 = vmatpush1.msra.mxu0 0.0
        %680 = vmatprep.subr.mxu0 0.0
        %681 = vmatpush1.msra.mxu0 0.0
        %682 = vmatprep.subr.mxu0 0.0
        %683 = vmatpush1.msra.mxu0 0.0
        %684 = vmatprep.mubr.f32.mxu0 0.0
        %685 = vmatmul.mubr.f32.gmra.mrb[0].mxu0 %v537
        %v686 = vpop.f32.mrb[0].mxu0
        %v687 = vadd.f32 %v533, %v686
        %v688 = vpop.f32.mrb[0].mxu0
        %689 = vdwg.mxu0
        %v690 = vmul.f32 %v616, 0.5
        %v691 = vmul.f32 %v618, 0.5
        %v692 = vmul.f32 %v687, 0.5
        %v693 = vmul.f32 %v616, 0.70710677
        %v694 = vmul.f32 %v618, 0.70710677
        %v695 = vmul.f32 %v687, 0.70710677
        %v696 = vand.u32 2147483647, %v693
        %v697 = vand.u32 2147483647, %v694
        %v698 = vand.u32 2147483647, %v695
        %v699 = vmul.f32 %v696, 0.3275911
        %v700 = vmul.f32 %v697, 0.3275911
        %v701 = vmul.f32 %v698, 0.3275911
        %v702 = vadd.f32 %v699, 1.0
        %v703 = vadd.f32 %v700, 1.0
        %v704 = vadd.f32 %v701, 1.0
        %v705 = vrcp.pop %v702
        %v706 = vrcp.pop %v703
        %v707 = vrcp.pop %v704
        %v708 = vmul.f32 %v702, %v705
        %v709 = vmul.f32 %v703, %v706
        %v710 = vmul.f32 %v704, %v707
        %v711 = vsub.f32 2.0, %v708
        %v712 = vsub.f32 2.0, %v709
        %v713 = vsub.f32 2.0, %v710
        %v714 = vmul.f32 %v705, %v711
        %v715 = vmul.f32 %v706, %v712
        %v716 = vmul.f32 %v707, %v713
        %v717 = vmul.f32 %v714, 1.0614054
        %v718 = vmul.f32 %v715, 1.0614054
        %v719 = vmul.f32 %v716, 1.0614054
        %v720 = vadd.f32 %v717, -1.4531521
        %v721 = vadd.f32 %v718, -1.4531521
        %v722 = vadd.f32 %v719, -1.4531521
        %v723 = vmul.f32 %v720, %v714
        %v724 = vmul.f32 %v721, %v715
        %v725 = vmul.f32 %v722, %v716
        %v726 = vadd.f32 %v723, 1.4214138
        %v727 = vadd.f32 %v724, 1.4214138
        %v728 = vadd.f32 %v725, 1.4214138
        %v729 = vmul.f32 %v726, %v714
        %v730 = vmul.f32 %v727, %v715
        %v731 = vmul.f32 %v728, %v716
        %v732 = vadd.f32 %v729, -0.28449672
        %v733 = vadd.f32 %v730, -0.28449672
        %v734 = vadd.f32 %v731, -0.28449672
        %v735 = vmul.f32 %v732, %v714
        %v736 = vmul.f32 %v733, %v715
        %v737 = vmul.f32 %v734, %v716
        %v738 = vadd.f32 %v735, 0.2548296
        %v739 = vadd.f32 %v736, 0.2548296
        %v740 = vadd.f32 %v737, 0.2548296
        %v741 = vmul.f32 %v738, %v714
        %v742 = vmul.f32 %v739, %v715
        %v743 = vmul.f32 %v740, %v716
        %v744 = vmul.f32 %v696, %v696
        %v745 = vmul.f32 %v697, %v697
        %v746 = vmul.f32 %v698, %v698
        %v747 = vsub.f32 0.0, %v744
        %v748 = vsub.f32 0.0, %v745
        %v749 = vsub.f32 0.0, %v746
        %v750 = vmul.f32 %v747, 1.442695
        %v751 = vpow.pop %v750
        %v752 = vmul.f32 %v748, 1.442695
        %v753 = vpow.pop %v752
        %v754 = vmul.f32 %v749, 1.442695
        %v755 = vpow.pop %v754
        %v756 = vmul.f32 %v741, %v751
        %v757 = vmul.f32 %v742, %v753
        %v758 = vmul.f32 %v743, %v755
        %v759 = vsub.f32 1.0, %v756
        %v760 = vsub.f32 1.0, %v757
        %v761 = vsub.f32 1.0, %v758
        %vm762 = vcmp.lt.f32.partialorder %v693, 0.0
        %vm763 = vcmp.lt.f32.partialorder %v694, 0.0
        %vm764 = vcmp.lt.f32.partialorder %v695, 0.0
        %v765 = vsub.f32 0.0, %v759
        %v766 = vsub.f32 0.0, %v760
        %v767 = vsub.f32 0.0, %v761
        %v768 = vsel %vm762, %v765, %v759
        %v769 = vsel %vm763, %v766, %v760
        %v770 = vsel %vm764, %v767, %v761
        %v771 = vadd.f32 %v768, 1.0
        %v772 = vadd.f32 %v769, 1.0
        %v773 = vadd.f32 %v770, 1.0
        %v774 = vmul.f32 %v690, %v771
        %v775 = vmul.f32 %v691, %v772
        %v776 = vmul.f32 %v692, %v773
        %777 = vst [vmem:[%s468] sm:$0xf] %v775
        %v778 = vlaneseq
        %v779 = vand.u32 %v778, 127
        %v780 = vstv %s527
        %v781 = vadd.s32 %v780, %v779
        %v782 = vld [vmem:[%s507] sm:$0x1]
        %v783 = vld [vmem:[%s519] sm:$0xf]
        %v784 = vld [vmem:[%s519 + $0x4] sm:$0xf]
        %v785 = vld [vmem:[%s519 + $0x8] sm:$0xf]
        %v786 = vld [vmem:[%s519 + $0xc] sm:$0xf]
        %v787 = vld [vmem:[%s519 + $0x10] sm:$0xf]
        %v788 = vld [vmem:[%s519 + $0x14] sm:$0xf]
        %v789 = vld [vmem:[%s519 + $0x18] sm:$0xf]
        %v790 = vld [vmem:[%s519 + $0x1c] sm:$0xf]
        %v791 = vld [vmem:[%s519 + $0x20] sm:$0xf]
        %792 = vrot.lane.b32.xlu0 %v774, 17
        %v793 = vpop.permute.xlu0 %792
        %794 = vrot.lane.b32.xlu0 %v775, 17
        %v795 = vpop.permute.xlu0 %794
        %vm796 = vcmp.lt.s32.totalorder %v779, 17
        %v797 = vsel %vm796, %v793, %v795
        %vm798 = vcmp.ge.s32.totalorder %v781, 16
        %vm799 = vcmp.ge.s32.totalorder %v782, 1
        %vm800 = vmand %vm798, %vm799
        %v801 = vsel %vm800, 1, 0
        %v802 = vlaneseq
        %v803 = vshrl.u32 %v802, 7
        %v804 = vsub.s32 0, %v803
        %v805 = vrot.slane %v801, %v804
        %vm806 = vcmp.eq.s32.totalorder %v805, 1
        %v807 = vsel %vm806, %v797, 0.0
        %809 = vset.pattern.permute.xlu0 0
        %810 = vperm.xlu0 %809, %v783
        %v811 = vpop.permute.xlu0 %810
        %v813 = vmul.f32 %v807, %v811
        %v814 = vadd.f32 %v813, 0.0
        %815 = vrot.lane.b32.xlu0 %v774, 16
        %v816 = vpop.permute.xlu0 %815
        %817 = vrot.lane.b32.xlu0 %v775, 16
        %v818 = vpop.permute.xlu0 %817
        %vm819 = vcmp.lt.s32.totalorder %v779, 16
        %v820 = vsel %vm819, %v816, %v818
        %v821 = vsel %vm798, 1, 0
        %vm822 = vcmp.eq.s32.totalorder %v821, 1
        %v823 = vsel %vm822, %v820, 0.0
        %825 = vset.pattern.permute.xlu0 0
        %826 = vperm.xlu0 %825, %v784
        %v827 = vpop.permute.xlu0 %826
        %v829 = vmul.f32 %v823, %v827
        %v830 = vadd.f32 %v814, %v829
        %831 = vrot.lane.b32.xlu0 %v774, 15
        %v832 = vpop.permute.xlu0 %831
        %833 = vrot.lane.b32.xlu0 %v775, 15
        %v834 = vpop.permute.xlu0 %833
        %vm835 = vcmp.lt.s32.totalorder %v779, 15
        %v836 = vsel %vm835, %v832, %v834
        %vm837 = vcmp.lt.s32.totalorder %v782, 15
        %vm838 = vmand %vm798, %vm837
        %v839 = vsel %vm838, 1, 0
        %v840 = vlaneseq
        %v841 = vshrl.u32 %v840, 7
        %v842 = vsub.s32 0, %v841
        %v843 = vrot.slane %v839, %v842
        %vm844 = vcmp.eq.s32.totalorder %v843, 1
        %v845 = vsel %vm844, %v836, 0.0
        %847 = vset.pattern.permute.xlu0 0
        %848 = vperm.xlu0 %847, %v785
        %v849 = vpop.permute.xlu0 %848
        %v851 = vmul.f32 %v845, %v849
        %v852 = vadd.f32 %v830, %v851
        %853 = vrot.lane.b32.xlu0 %v774, 1
        %v854 = vpop.permute.xlu0 %853
        %855 = vrot.lane.b32.xlu0 %v775, 1
        %v856 = vpop.permute.xlu0 %855
        %vm857 = vcmp.lt.s32.totalorder %v779, 1
        %v858 = vsel %vm857, %v854, %v856
        %v859 = vsel %vm799, 1, 0
        %v860 = vlaneseq
        %v861 = vshrl.u32 %v860, 7
        %v862 = vsub.s32 0, %v861
        %v863 = vrot.slane %v859, %v862
        %vm864 = vcmp.eq.s32.totalorder %v863, 1
        %v865 = vsel %vm864, %v858, 0.0
        %867 = vset.pattern.permute.xlu0 0
        %868 = vperm.xlu0 %867, %v786
        %v869 = vpop.permute.xlu0 %868
        %v871 = vmul.f32 %v865, %v869
        %v872 = vadd.f32 %v852, %v871
        %874 = vset.pattern.permute.xlu0 0
        %875 = vperm.xlu0 %874, %v787
        %v876 = vpop.permute.xlu0 %875
        %v878 = vmul.f32 %v775, %v876
        %v879 = vadd.f32 %v872, %v878
        %880 = vrot.lane.b32.xlu0 %v775, 127
        %v881 = vpop.permute.xlu0 %880
        %882 = vrot.lane.b32.xlu0 %v776, 127
        %v883 = vpop.permute.xlu0 %882
        %vm884 = vcmp.lt.s32.totalorder %v779, 127
        %v885 = vsel %vm884, %v881, %v883
        %v886 = vsel %vm837, 1, 0
        %v887 = vlaneseq
        %v888 = vshrl.u32 %v887, 7
        %v889 = vsub.s32 0, %v888
        %v890 = vrot.slane %v886, %v889
        %vm891 = vcmp.eq.s32.totalorder %v890, 1
        %v892 = vsel %vm891, %v885, 0.0
        %894 = vset.pattern.permute.xlu0 0
        %895 = vperm.xlu0 %894, %v788
        %v896 = vpop.permute.xlu0 %895
        %v898 = vmul.f32 %v892, %v896
        %v899 = vadd.f32 %v879, %v898
        %900 = vrot.lane.b32.xlu0 %v775, 113
        %v901 = vpop.permute.xlu0 %900
        %902 = vrot.lane.b32.xlu0 %v776, 113
        %v903 = vpop.permute.xlu0 %902
        %vm904 = vcmp.lt.s32.totalorder %v779, 113
        %v905 = vsel %vm904, %v901, %v903
        %vm906 = vcmp.lt.s32.totalorder %v781, 240
        %vm907 = vmand %vm906, %vm799
        %v908 = vsel %vm907, 1, 0
        %v909 = vlaneseq
        %v910 = vshrl.u32 %v909, 7
        %v911 = vsub.s32 0, %v910
        %v912 = vrot.slane %v908, %v911
        %vm913 = vcmp.eq.s32.totalorder %v912, 1
        %v914 = vsel %vm913, %v905, 0.0
        %916 = vset.pattern.permute.xlu0 0
        %917 = vperm.xlu0 %916, %v789
        %v918 = vpop.permute.xlu0 %917
        %v920 = vmul.f32 %v914, %v918
        %v921 = vadd.f32 %v899, %v920
        %922 = vrot.lane.b32.xlu0 %v775, 112
        %v923 = vpop.permute.xlu0 %922
        %924 = vrot.lane.b32.xlu0 %v776, 112
        %v925 = vpop.permute.xlu0 %924
        %vm926 = vcmp.lt.s32.totalorder %v779, 112
        %v927 = vsel %vm926, %v923, %v925
        %v928 = vsel %vm906, 1, 0
        %vm929 = vcmp.eq.s32.totalorder %v928, 1
        %v930 = vsel %vm929, %v927, 0.0
        %932 = vset.pattern.permute.xlu0 0
        %933 = vperm.xlu0 %932, %v790
        %v934 = vpop.permute.xlu0 %933
        %v936 = vmul.f32 %v930, %v934
        %v937 = vadd.f32 %v921, %v936
        %938 = vrot.lane.b32.xlu0 %v775, 111
        %v939 = vpop.permute.xlu0 %938
        %940 = vrot.lane.b32.xlu0 %v776, 111
        %v941 = vpop.permute.xlu0 %940
        %vm942 = vcmp.lt.s32.totalorder %v779, 111
        %v943 = vsel %vm942, %v939, %v941
        %vm944 = vmand %vm906, %vm837
        %v945 = vsel %vm944, 1, 0
        %v946 = vlaneseq
        %v947 = vshrl.u32 %v946, 7
        %v948 = vsub.s32 0, %v947
        %v949 = vrot.slane %v945, %v948
        %vm950 = vcmp.eq.s32.totalorder %v949, 1
        %v951 = vsel %vm950, %v943, 0.0
        %953 = vset.pattern.permute.xlu0 0
        %954 = vperm.xlu0 %953, %v791
        %v955 = vpop.permute.xlu0 %954
        %v957 = vmul.f32 %v951, %v955
        %v958 = vadd.f32 %v937, %v957
        %v959 = vld [vmem:[%s523] sm:$0xf]
        %961 = vset.pattern.permute.xlu0 0
        %962 = vperm.xlu0 %961, %v959
        %v963 = vpop.permute.xlu0 %962
        %v965 = vadd.f32 %v958, %v963
        %v966 = vmul.f32 %v965, 0.5
        %v967 = vmul.f32 %v965, 0.70710677
        %v968 = vand.u32 2147483647, %v967
        %v969 = vmul.f32 %v968, 0.3275911
        %v970 = vadd.f32 %v969, 1.0
        %v971 = vrcp.pop %v970
        %v972 = vmul.f32 %v970, %v971
        %v973 = vsub.f32 2.0, %v972
        %v974 = vmul.f32 %v971, %v973
        %v975 = vmul.f32 %v974, 1.0614054
        %v976 = vadd.f32 %v975, -1.4531521
        %v977 = vmul.f32 %v976, %v974
        %v978 = vadd.f32 %v977, 1.4214138
        %v979 = vmul.f32 %v978, %v974
        %v980 = vadd.f32 %v979, -0.28449672
        %v981 = vmul.f32 %v980, %v974
        %v982 = vadd.f32 %v981, 0.2548296
        %v983 = vmul.f32 %v982, %v974
        %v984 = vmul.f32 %v968, %v968
        %v985 = vsub.f32 0.0, %v984
        %v986 = vmul.f32 %v985, 1.442695
        %v987 = vpow.pop %v986
        %v988 = vmul.f32 %v983, %v987
        %v989 = vsub.f32 1.0, %v988
        %vm990 = vcmp.lt.f32.partialorder %v967, 0.0
        %v991 = vsub.f32 0.0, %v989
        %v992 = vsel %vm990, %v991, %v989
        %v993 = vadd.f32 %v992, 1.0
        %v994 = vmul.f32 %v966, %v993
        %s995 = scalar_lea.vmem %s468, 4 [#allocation2]
        %996 = vst [vmem:[%s995] sm:$0xf] %v994
        %s997 = sand.u32 %s279, 1
        %s998 = scalar_lea.sflag [#allocation3], %s997
        %s999 = sand.u32 %s279, 1
        %s1000 = smul.addr %s999, 8
        %s1001 = scalar_lea.vmem [#allocation2], %s1000
        // Predicated region
        $region53: #{tpu_custom_call.1} parent=51 // pred_check
          %p1002 = pneg %p289
        $region54: #{tpu_custom_call.1} parent=51 // pred_check_branch
          %1004 = sbr.rel (%p1002) target = $region56
        $region55: #{tpu_custom_call.1} parent=51 // pred_region
          %s1006 = ssub.s32 128, 128
          %1007 = vsyncadd %s998, %s1006
          %s1008 = smul.addr %s28, 2
          %s1009 = sadd.s32 %s29, %s1008
          %s1010 = smul.addr %s27, 4
          %s1011 = sadd.s32 %s1009, %s1010
          %s1012 = smul.addr %s1011, 64
          %s1013 = scalar_lea.hbm %s8, %s1012
          %s1014 = sshll.u32 %s1001, 4
          %s1015 = int_to_ptr.vmem [resolvable:$true] %s1014
          %1020 = dma.vmem_to_hbm [thread:$0]  %s1015, 128, %s1013, %s998, 64, 128, 4
        $region56: #{tpu_custom_call.1} parent=51 // pred_fallthru
          _
      $region52: #{tpu_custom_call.1} parent=5 // pred_fallthru
        _
      %p1021 = scmp.le.s32.totalorder 2, %s17
      // Predicated region
      $region57: #{tpu_custom_call.1} parent=5 // pred_check
        %p1022 = pneg %p1021
      $region58: #{tpu_custom_call.1} parent=5 // pred_check_branch
        %1024 = sbr.rel (%p1022) target = $region60
      $region59: #{tpu_custom_call.1} parent=5 // pred_region
        %s1025 = ssub.s32 %s17, 2
        // Predicated region
        $region61: #{tpu_custom_call.1} parent=59 // pred_check
          %p1026 = pneg %p295
        $region62: #{tpu_custom_call.1} parent=59 // pred_check_branch
          %1028 = sbr.rel (%p1026) target = $region64
        $region63: #{tpu_custom_call.1} parent=59 // pred_region
          %s1029 = sand.u32 %s280, 1
          %s1030 = scalar_lea.sflag [#allocation3], %s1029
          %s1031 = sand.u32 %s280, 1
          %s1032 = smul.addr %s1031, 8
          %s1033 = scalar_lea.vmem [#allocation2], %s1032
          %1034 = dma.done %s1030, 128
        $region64: #{tpu_custom_call.1} parent=59 // pred_fallthru
          _
      $region60: #{tpu_custom_call.1} parent=5 // pred_fallthru
        _
    $region6: #{tpu_custom_call.1} parent=1 // loop_footer
      %s21 = sadd.s32 1, %s17
    $region7: #{tpu_custom_call.1} parent=1 // loop_footer_branch
      %16 = sbr.rel target = $region3
    $region8: #{tpu_custom_call.1} parent=1 // loop_exit
      _
    %1035 = vsyncpa [#allocation3], 1
    %s1036 = scalar_lea.sflag [#allocation3], 1
    %1037 = vsyncpa %s1036, 1

</llo_original>
